<compile_context>
chip_gen: v5e
topology: v5e:2x2
jax: 0.10.0
libtpu: 0.0.40
codegen_flags: <defaults>
</compile_context>

<pallas_src>
import functools

import jax
import jax.numpy as jnp
from jax.experimental import pallas as pl
from jax.experimental.pallas import tpu as pltpu

NEG_SLOPE = 0.2


def _round_up(x, m):
    return -(-x // m) * m


def _pick_m_tiling(M, cap=512):
    """Pad M and pick a row tile: large tiles, but always >= 2 grid steps."""
    Mp = _round_up(max(M, 16), 16)
    tm = max(8, min(cap, Mp // 2))
    Mp = _round_up(Mp, tm)
    return Mp, tm


# ----------------------------------------------------------------------------
# Kernel A: out = (leaky_relu(x) if apply_lrelu else x) @ w      (no bias)
#   x: (tm, K) f32/bf16 tile, w: (K, NP) bf16 resident, out: (tm, NP) bf16
#   NP is a multiple of 128 (zero-padded weight columns) -> lane-dense stores.
# ----------------------------------------------------------------------------
def _conv_gemm_kernel(x_ref, w_ref, o_ref, *, apply_lrelu):
    x = x_ref[...]
    if apply_lrelu:
        x = jnp.where(x >= 0, x, NEG_SLOPE * x)
    acc = jnp.dot(x.astype(jnp.bfloat16), w_ref[...],
                  preferred_element_type=jnp.float32)
    o_ref[...] = acc.astype(o_ref.dtype)


def conv_gemm(x, w_pad, *, apply_lrelu):
    """x: (M, K), w_pad: (K, NP) bf16 with NP % 128 == 0 -> (M, NP) bf16."""
    M, K = x.shape
    Kw, NP = w_pad.shape
    assert K == Kw and NP % 128 == 0
    Mp, tm = _pick_m_tiling(M)
    if Mp != M:
        x = jnp.pad(x, ((0, Mp - M), (0, 0)))
    kern = functools.partial(_conv_gemm_kernel, apply_lrelu=apply_lrelu)
    out = pl.pallas_call(
        kern,
        out_shape=jax.ShapeDtypeStruct((Mp, NP), jnp.bfloat16),
        grid=(Mp // tm,),
        in_specs=[
            pl.BlockSpec((tm, K), lambda i: (i, 0)),   # activation tile
            pl.BlockSpec((K, NP), lambda i: (0, 0)),   # full bf16 weight, resident
        ],
        out_specs=pl.BlockSpec((tm, NP), lambda i: (i, 0)),
        compiler_params=pltpu.CompilerParams(dimension_semantics=("parallel",)),
    )(x, w_pad)
    return out[:M]


# ----------------------------------------------------------------------------
# Kernel B: fused tail.  For a tile of `ipt` images (rpi = Ho*Wo rows each):
#   h   = leaky_relu(patches) @ w_conv            (conv, bf16 MXU, f32 acc)
#   h   = leaky_relu(h)
#   out = sum_{hw, c} h[img, hw, c] * fcw[hw, c] + fc_b   (Linear, f32)
# fcw is fc_w pre-permuted to NHWC-flatten order, so no transpose is needed.
# ----------------------------------------------------------------------------
def _tail_kernel(x_ref, w_ref, fcw_ref, fcb_ref, o_ref, *, apply_lrelu, ipt, rpi):
    x = x_ref[...]
    if apply_lrelu:
        x = jnp.where(x >= 0, x, NEG_SLOPE * x)
    h = jnp.dot(x.astype(jnp.bfloat16), w_ref[...],
                preferred_element_type=jnp.float32)          # (ipt*rpi, NP)
    h = jnp.where(h >= 0, h, NEG_SLOPE * h)
    NP = h.shape[-1]
    prod = h.reshape(ipt, rpi, NP) * fcw_ref[...][None, :, :]
    s = jnp.sum(prod, axis=2)                                # (ipt, rpi)
    val = jnp.sum(s, axis=1, keepdims=True) + fcb_ref[0, 0]  # (ipt, 1)
    o_ref[...] = val.astype(o_ref.dtype)


def tail_conv_fc(patches, w_pad, fcw_mat, fcb, batch, rpi, *, apply_lrelu):
    """patches: (batch*rpi, K), w_pad: (K, NP) bf16, fcw_mat: (rpi, NP) f32,
    fcb: (1, 1) f32 -> (batch, 1) f32."""
    M, K = patches.shape
    NP = w_pad.shape[1]
    if batch <= 8:
        Bp, ipt = batch, batch
    else:
        Bp, ipt = _round_up(batch, 8), 8
    Mp = Bp * rpi
    if Mp != M:
        patches = jnp.pad(patches, ((0, Mp - M), (0, 0)))
    tm = ipt * rpi
    kern = functools.partial(_tail_kernel, apply_lrelu=apply_lrelu,
                             ipt=ipt, rpi=rpi)
    out = pl.pallas_call(
        kern,
        out_shape=jax.ShapeDtypeStruct((Bp, 1), jnp.float32),
        grid=(Bp // ipt,),
        in_specs=[
            pl.BlockSpec((tm, K), lambda i: (i, 0)),     # im2col tile (whole images)
            pl.BlockSpec((K, NP), lambda i: (0, 0)),     # conv weight, resident
            pl.BlockSpec((rpi, NP), lambda i: (0, 0)),   # FC weight (NHWC order)
            pl.BlockSpec(memory_space=pltpu.MemorySpace.SMEM),  # fc bias scalar
        ],
        out_specs=pl.BlockSpec((ipt, 1), lambda i: (i, 0)),
        compiler_params=pltpu.CompilerParams(dimension_semantics=("parallel",)),
    )(patches, w_pad, fcw_mat, fcb)
    return out[:batch]


# ----------------------------------------------------------------------------
# Glue: im2col (pure slicing / reshape, no arithmetic; fused by XLA under jit)
# ----------------------------------------------------------------------------
def im2col(x_nhwc, k=4, stride=2, pad=1):
    N, H, W, C = x_nhwc.shape
    xp = jnp.pad(x_nhwc, ((0, 0), (pad, pad), (pad, pad), (0, 0)))
    Ho = (H + 2 * pad - k) // stride + 1
    Wo = (W + 2 * pad - k) // stride + 1
    cols = []
    for kh in range(k):
        for kw in range(k):
            patch = jax.lax.slice(
                xp,
                (0, kh, kw, 0),
                (N, kh + stride * (Ho - 1) + 1, kw + stride * (Wo - 1) + 1, C),
                (1, stride, stride, 1),
            )  # (N, Ho, Wo, C)
            cols.append(patch)
    patches = jnp.stack(cols, axis=3)                 # (N, Ho, Wo, k*k, C)
    return patches.reshape(N * Ho * Wo, k * k * C), (N, Ho, Wo)


# ----------------------------------------------------------------------------
# Weight prep: OIHW -> (kh*kw*ci, co) padded to 128 lanes, bf16; fc_w permuted
# to NHWC-flatten order (one-time cost, constant-folded-free under jit).
# ----------------------------------------------------------------------------
def prepare_weights(conv_ws, fc_w, fc_b, final_size):
    conv_mats = []
    for w in conv_ws:
        C_out, C_in, kH, kW = w.shape
        NP = _round_up(C_out, 128)
        w_mat = jnp.transpose(w, (2, 3, 1, 0)).reshape(kH * kW * C_in, C_out)
        w_mat = jnp.pad(w_mat, ((0, 0), (0, NP - C_out))).astype(jnp.bfloat16)
        conv_mats.append(w_mat)
    C_last = conv_ws[-1].shape[0]
    NP_last = _round_up(C_last, 128)
    H = W = final_size
    # fc_w indexed (c, h, w)  ->  (h*W + w, c), zero-padded channels.
    fcw = fc_w.reshape(C_last, H, W).transpose(1, 2, 0).reshape(H * W, C_last)
    fcw = jnp.pad(fcw, ((0, 0), (0, NP_last - C_last))).astype(jnp.float32)
    fcb = fc_b.reshape(1, 1).astype(jnp.float32)
    return conv_mats, fcw, fcb


# ----------------------------------------------------------------------------
# Discriminator forward
# ----------------------------------------------------------------------------
def discriminator_forward(x_nchw, conv_ws, fc_w, fc_b):
    """x_nchw: (N, C, 64, 64). conv_ws: list of OIHW conv weights (no bias).
    fc_w: (1, feat) PyTorch Linear weight, fc_b: (1,) bias."""
    L = len(conv_ws)
    batch = x_nchw.shape[0]
    final_size = x_nchw.shape[2] // 2 ** L
    conv_mats, fcw_mat, fcb = prepare_weights(conv_ws, fc_w, fc_b, final_size)

    y = jnp.transpose(x_nchw, (0, 2, 3, 1))  # -> NHWC
    for i in range(L - 1):
        C_out = conv_ws[i].shape[0]
        patches, (n, Ho, Wo) = im2col(y)
        # LeakyReLU precedes every conv except the first; applying it to the
        # im2col matrix is equivalent (leaky(0) == 0 for padded entries).
        out = conv_gemm(patches, conv_mats[i], apply_lrelu=(i > 0))
        y = out[:, :C_out].reshape(n, Ho, Wo, C_out)   # bf16 activations

    # Fused tail: LeakyReLU -> last conv -> LeakyReLU -> Flatten -> Linear.
    patches, (n, Ho, Wo) = im2col(y)
    rpi = Ho * Wo
    return tail_conv_fc(patches, conv_mats[-1], fcw_mat, fcb, batch, rpi,
                        apply_lrelu=(L > 1))


# ----------------------------------------------------------------------------
# Pure-JAX reference (mirrors the PyTorch module exactly, f32 HIGHEST)
# ----------------------------------------------------------------------------
def reference_forward(x_nchw, conv_ws, fc_w, fc_b):
    y = x_nchw
    for i, w in enumerate(conv_ws):
        if i > 0:
            y = jnp.where(y >= 0, y, NEG_SLOPE * y)
        y = jax.lax.conv_general_dilated(
            y, w, window_strides=(2, 2), padding=((1, 1), (1, 1)),
            dimension_numbers=("NCHW", "OIHW", "NCHW"),
            precision=jax.lax.Precision.HIGHEST)
    y = jnp.where(y >= 0, y, NEG_SLOPE * y)
    y = y.reshape(y.shape[0], -1)
    return jnp.dot(y, fc_w.T, precision=jax.lax.Precision.HIGHEST) + fc_b


# ----------------------------------------------------------------------------
if __name__ == "__main__":
    # Small config.  NOTE: spatial size must be 64x64 because the module
    # hard-codes final_size = 64 // 2**len(layer_list).
    layer_list = [16, 32, 64]
    img_channels = 1
    batch = 2
    final_size = 64 // 2 ** len(layer_list)           # 8
    feat = layer_list[-1] * final_size ** 2           # 4096

    key = jax.random.PRNGKey(0)
    ks = jax.random.split(key, len(layer_list) + 3)

    conv_ws = []
    c_in = img_channels
    for i, c_out in enumerate(layer_list):
        conv_ws.append(0.05 * jax.random.normal(ks[i], (c_out, c_in, 4, 4),
                                                dtype=jnp.float32))
        c_in = c_out
    fc_w = 0.05 * jax.random.normal(ks[-3], (1, feat), dtype=jnp.float32)
    fc_b = 0.05 * jax.random.normal(ks[-2], (1,), dtype=jnp.float32)
    x = jax.random.normal(ks[-1], (batch, img_channels, 64, 64), dtype=jnp.float32)

    fwd = jax.jit(discriminator_forward)
    out = jax.block_until_ready(fwd(x, conv_ws, fc_w, fc_b))
    assert out.shape == (batch, 1), out.shape

    ref = jax.block_until_ready(reference_forward(x, conv_ws, fc_w, fc_b))
    # bf16 MXU operands (f32 accumulation) -> slightly looser tolerance.
    assert jnp.allclose(out, ref, rtol=2e-2, atol=2e-2), (out, ref)

    print("KERNEL_OK")
</pallas_src>

<mosaic_0001>
module attributes {stable_mosaic.version = 11 : i64} {
  func.func @_conv_gemm_kernel(%arg0: i32, %arg1: memref<512x16xf32, #tpu.memory_space<vmem>>, %arg2: memref<16x128xbf16, #tpu.memory_space<vmem>>, %arg3: memref<512x128xbf16, #tpu.memory_space<vmem>>) attributes {dimension_semantics = [#tpu.dimension_semantics<parallel>], iteration_bounds = array<i64: 4>, scalar_prefetch = 0 : i64, scratch_operands = 0 : i64, tpu.core_type = #tpu.core_type<tc>, window_params = [{transform_indices = @transform_0, window_bounds = array<i64: 512, 16>}, {pipeline_mode = #tpu.pipeline_mode<synchronous>, transform_indices = @transform_1, window_bounds = array<i64: 16, 128>}, {transform_indices = @transform_2, window_bounds = array<i64: 512, 128>}]} {
    %c0 = arith.constant 0 : index
    %c0_0 = arith.constant 0 : index
    %0 = vector.load %arg1[%c0, %c0_0] : memref<512x16xf32, #tpu.memory_space<vmem>>, vector<512x16xf32>
    %1 = arith.truncf %0 : vector<512x16xf32> to vector<512x16xbf16>
    %c0_1 = arith.constant 0 : index
    %c0_2 = arith.constant 0 : index
    %2 = vector.load %arg2[%c0_1, %c0_2] : memref<16x128xbf16, #tpu.memory_space<vmem>>, vector<16x128xbf16>
    %cst = arith.constant dense<0.000000e+00> : vector<512x128xf32>
    %3 = tpu.matmul %1, %2, %cst {dimension_numbers = #tpu.dot_dimension_numbers<[1], [0], [0], [1], [0, 0, 1, 1], [], []>} : vector<512x16xbf16>, vector<16x128xbf16>, vector<512x128xf32> -> vector<512x128xf32>
    %4 = arith.truncf %3 : vector<512x128xf32> to vector<512x128xbf16>
    %c0_3 = arith.constant 0 : index
    %c0_4 = arith.constant 0 : index
    %5 = vector.load %arg3[%c0_3, %c0_4] : memref<512x128xbf16, #tpu.memory_space<vmem>>, vector<512x128xbf16>
    tpu.vector_store %arg3[%c0_3, %c0_4], %4 {strides = array<i32>} : memref<512x128xbf16, #tpu.memory_space<vmem>>, vector<512x128xbf16>,
    return
  }
  func.func @transform_0(%arg0: i32) -> (i32, i32) {
    %c0_i32 = arith.constant 0 : i32
    %c0_i32_0 = arith.constant 0 : i32
    return %arg0, %c0_i32 : i32, i32
  }
  func.func @transform_1(%arg0: i32) -> (i32, i32) {
    %c0_i32 = arith.constant 0 : i32
    %c0_i32_0 = arith.constant 0 : i32
    %c0_i32_1 = arith.constant 0 : i32
    return %c0_i32, %c0_i32_0 : i32, i32
  }
  func.func @transform_2(%arg0: i32) -> (i32, i32) {
    %c0_i32 = arith.constant 0 : i32
    %c0_i32_0 = arith.constant 0 : i32
    return %arg0, %c0_i32 : i32, i32
  }
}

module attributes {stable_mosaic.version = 11 : i64} {
  func.func @_conv_gemm_kernel(%arg0: i32, %arg1: memref<256x256xbf16, #tpu.memory_space<vmem>>, %arg2: memref<256x128xbf16, #tpu.memory_space<vmem>>, %arg3: memref<256x128xbf16, #tpu.memory_space<vmem>>) attributes {dimension_semantics = [#tpu.dimension_semantics<parallel>], iteration_bounds = array<i64: 2>, scalar_prefetch = 0 : i64, scratch_operands = 0 : i64, tpu.core_type = #tpu.core_type<tc>, window_params = [{transform_indices = @transform_0, window_bounds = array<i64: 256, 256>}, {pipeline_mode = #tpu.pipeline_mode<synchronous>, transform_indices = @transform_1, window_bounds = array<i64: 256, 128>}, {transform_indices = @transform_2, window_bounds = array<i64: 256, 128>}]} {
    %c0 = arith.constant 0 : index
    %c0_0 = arith.constant 0 : index
    %0 = vector.load %arg1[%c0, %c0_0] : memref<256x256xbf16, #tpu.memory_space<vmem>>, vector<256x256xbf16>
    %cst = arith.constant 0.000000e+00 : bf16
    %1 = vector.broadcast %cst : bf16 to vector<256x256xbf16>
    %2 = arith.cmpf oge, %0, %1 : vector<256x256xbf16>
    %cst_1 = arith.constant 2.001950e-01 : bf16
    %3 = vector.broadcast %cst_1 : bf16 to vector<256x256xbf16>
    %4 = arith.mulf %3, %0 : vector<256x256xbf16>
    %5 = arith.select %2, %0, %4 : vector<256x256xi1>, vector<256x256xbf16>
    %c0_2 = arith.constant 0 : index
    %c0_3 = arith.constant 0 : index
    %6 = vector.load %arg2[%c0_2, %c0_3] : memref<256x128xbf16, #tpu.memory_space<vmem>>, vector<256x128xbf16>
    %cst_4 = arith.constant dense<0.000000e+00> : vector<256x128xf32>
    %7 = tpu.matmul %5, %6, %cst_4 {dimension_numbers = #tpu.dot_dimension_numbers<[1], [0], [0], [1], [0, 0, 1, 1], [], []>} : vector<256x256xbf16>, vector<256x128xbf16>, vector<256x128xf32> -> vector<256x128xf32>
    %8 = arith.truncf %7 : vector<256x128xf32> to vector<256x128xbf16>
    %c0_5 = arith.constant 0 : index
    %c0_6 = arith.constant 0 : index
    %9 = vector.load %arg3[%c0_5, %c0_6] : memref<256x128xbf16, #tpu.memory_space<vmem>>, vector<256x128xbf16>
    tpu.vector_store %arg3[%c0_5, %c0_6], %8 {strides = array<i32>} : memref<256x128xbf16, #tpu.memory_space<vmem>>, vector<256x128xbf16>,
    return
  }
  func.func @transform_0(%arg0: i32) -> (i32, i32) {
    %c0_i32 = arith.constant 0 : i32
    %c0_i32_0 = arith.constant 0 : i32
    return %arg0, %c0_i32 : i32, i32
  }
  func.func @transform_1(%arg0: i32) -> (i32, i32) {
    %c0_i32 = arith.constant 0 : i32
    %c0_i32_0 = arith.constant 0 : i32
    %c0_i32_1 = arith.constant 0 : i32
    return %c0_i32, %c0_i32_0 : i32, i32
  }
  func.func @transform_2(%arg0: i32) -> (i32, i32) {
    %c0_i32 = arith.constant 0 : i32
    %c0_i32_0 = arith.constant 0 : i32
    return %arg0, %c0_i32 : i32, i32
  }
}

module attributes {stable_mosaic.version = 11 : i64} {
  func.func @_tail_kernel(%arg0: i32, %arg1: memref<128x512xbf16, #tpu.memory_space<vmem>>, %arg2: memref<512x128xbf16, #tpu.memory_space<vmem>>, %arg3: memref<64x128xf32, #tpu.memory_space<vmem>>, %arg4: memref<1x1xf32, #tpu.memory_space<smem>>, %arg5: memref<2x1xf32, #tpu.memory_space<vmem>>) attributes {dimension_semantics = [#tpu.dimension_semantics<parallel>], iteration_bounds = array<i64: 1>, scalar_prefetch = 0 : i64, scratch_operands = 0 : i64, tpu.core_type = #tpu.core_type<tc>, window_params = [{transform_indices = @transform_0, window_bounds = array<i64: 128, 512>}, {pipeline_mode = #tpu.pipeline_mode<synchronous>, transform_indices = @transform_1, window_bounds = array<i64: 512, 128>}, {pipeline_mode = #tpu.pipeline_mode<synchronous>, transform_indices = @transform_2, window_bounds = array<i64: 64, 128>}, {transform_indices = @transform_3, window_bounds = array<i64: 1, 1>}, {transform_indices = @transform_4, window_bounds = array<i64: 2, 1>}]} {
    %c0 = arith.constant 0 : index
    %c0_0 = arith.constant 0 : index
    %0 = vector.load %arg1[%c0, %c0_0] : memref<128x512xbf16, #tpu.memory_space<vmem>>, vector<128x512xbf16>
    %cst = arith.constant 0.000000e+00 : bf16
    %1 = vector.broadcast %cst : bf16 to vector<128x512xbf16>
    %2 = arith.cmpf oge, %0, %1 : vector<128x512xbf16>
    %cst_1 = arith.constant 2.001950e-01 : bf16
    %3 = vector.broadcast %cst_1 : bf16 to vector<128x512xbf16>
    %4 = arith.mulf %3, %0 : vector<128x512xbf16>
    %5 = arith.select %2, %0, %4 : vector<128x512xi1>, vector<128x512xbf16>
    %c0_2 = arith.constant 0 : index
    %c0_3 = arith.constant 0 : index
    %6 = vector.load %arg2[%c0_2, %c0_3] : memref<512x128xbf16, #tpu.memory_space<vmem>>, vector<512x128xbf16>
    %cst_4 = arith.constant dense<0.000000e+00> : vector<128x128xf32>
    %7 = tpu.matmul %5, %6, %cst_4 {dimension_numbers = #tpu.dot_dimension_numbers<[1], [0], [0], [1], [0, 0, 1, 1], [], []>} : vector<128x512xbf16>, vector<512x128xbf16>, vector<128x128xf32> -> vector<128x128xf32>
    %cst_5 = arith.constant 0.000000e+00 : f32
    %8 = vector.broadcast %cst_5 : f32 to vector<128x128xf32>
    %9 = arith.cmpf oge, %7, %8 : vector<128x128xf32>
    %cst_6 = arith.constant 2.000000e-01 : f32
    %10 = vector.broadcast %cst_6 : f32 to vector<128x128xf32>
    %11 = arith.mulf %10, %7 : vector<128x128xf32>
    %12 = arith.select %9, %7, %11 : vector<128x128xi1>, vector<128x128xf32>
    %13 = vector.shape_cast %12 : vector<128x128xf32> to vector<2x64x128xf32>
    %c0_7 = arith.constant 0 : index
    %c0_8 = arith.constant 0 : index
    %14 = vector.load %arg3[%c0_7, %c0_8] : memref<64x128xf32, #tpu.memory_space<vmem>>, vector<64x128xf32>
    %15 = vector.shape_cast %14 : vector<64x128xf32> to vector<1x64x128xf32>
    %16 = vector.broadcast %15 : vector<1x64x128xf32> to vector<2x64x128xf32>
    %17 = arith.mulf %13, %16 : vector<2x64x128xf32>
    %cst_9 = arith.constant dense<0.000000e+00> : vector<2x64xf32>
    %18 = vector.multi_reduction <add>, %17, %cst_9 [2] : vector<2x64x128xf32> to vector<2x64xf32>
    %cst_10 = arith.constant dense<0.000000e+00> : vector<2xf32>
    %19 = vector.multi_reduction <add>, %18, %cst_10 [1] : vector<2x64xf32> to vector<2xf32>
    %20 = vector.shape_cast %19 : vector<2xf32> to vector<2x1xf32>
    %c0_11 = arith.constant 0 : index
    %c0_12 = arith.constant 0 : index
    %21 = memref.load %arg4[%c0_11, %c0_12] : memref<1x1xf32, #tpu.memory_space<smem>>
    %22 = vector.broadcast %21 : f32 to vector<2x1xf32>
    %23 = arith.addf %20, %22 : vector<2x1xf32>
    %c0_13 = arith.constant 0 : index
    %c0_14 = arith.constant 0 : index
    %24 = vector.load %arg5[%c0_13, %c0_14] : memref<2x1xf32, #tpu.memory_space<vmem>>, vector<2x1xf32>
    tpu.vector_store %arg5[%c0_13, %c0_14], %23 {strides = array<i32>} : memref<2x1xf32, #tpu.memory_space<vmem>>, vector<2x1xf32>,
    return
  }
  func.func @transform_0(%arg0: i32) -> (i32, i32) {
    %c0_i32 = arith.constant 0 : i32
    %c0_i32_0 = arith.constant 0 : i32
    return %arg0, %c0_i32 : i32, i32
  }
  func.func @transform_1(%arg0: i32) -> (i32, i32) {
    %c0_i32 = arith.constant 0 : i32
    %c0_i32_0 = arith.constant 0 : i32
    %c0_i32_1 = arith.constant 0 : i32
    return %c0_i32, %c0_i32_0 : i32, i32
  }
  func.func @transform_2(%arg0: i32) -> (i32, i32) {
    %c0_i32 = arith.constant 0 : i32
    %c0_i32_0 = arith.constant 0 : i32
    %c0_i32_1 = arith.constant 0 : i32
    return %c0_i32, %c0_i32_0 : i32, i32
  }
  func.func @transform_3(%arg0: i32) -> (i32, i32) {
    %c0_i32 = arith.constant 0 : i32
    %c0_i32_0 = arith.constant 0 : i32
    %c0_i32_1 = arith.constant 0 : i32
    return %c0_i32, %c0_i32_0 : i32, i32
  }
  func.func @transform_4(%arg0: i32) -> (i32, i32) {
    %c0_i32 = arith.constant 0 : i32
    %c0_i32_0 = arith.constant 0 : i32
    return %arg0, %c0_i32 : i32, i32
  }
}

</mosaic_0001>

<llo_original>
// kernel: discriminator_forward.3
$region0: #{discriminator_forward.3}
  #allocation0 [shape = 'u32[]', space=smem, size = 0x4, offset = 0x4, fixed_abs, tag = 'smem constant byte address 0x4 - core index']
  #allocation1 [shape = 'u32[72,128]{1,0:T(1,128)}', space=vmem, size = 0x9000, scoped, tag = 'internal scratch']
  %s0 = inlined_call_operand.vmem [shape: f32[2048,16], index: 0, kind: input, shape index: {}]
  %s1 = inlined_call_operand.vmem [shape: bf16[16,128], index: 1, kind: input, shape index: {}]
  %s2 = inlined_call_operand.vmem [shape: bf16[2048,128], index: 2, kind: output, shape index: {}]
  %s3 = sld [smem:[#allocation0]]
  $region41: #{discriminator_forward.3} parent=0
    _
  %s5 = ssub.s32 1, %s3
  %s6 = scalar_select 0, %s5, %s3
  loop: start=0, step=1, limit=6
  $region2: #{discriminator_forward.3} parent=0 // loop_pre_header
    _
  $region3: #{discriminator_forward.3} parent=0 // loop_header
    %s8 = sphi 0, %s12
    %p9 = scmp.ge.s32.totalorder %s8, 6
    %s18 = sphi 0, %s20
    %s21 = sphi 0, %s18
    %s22 = sphi 0, %s21
    %s38 = sphi 0, %s22
    %s42 = sphi 0, %s42
    %s44 = sphi 0, %s42
    %s45 = sphi 0, %s44
    %s59 = sphi 0, %s45
    %s65 = sphi 0, %s67
    %s68 = sphi 0, %s65
    %s69 = sphi 0, %s68
    %s85 = sphi 0, %s69
  $region4: #{discriminator_forward.3} parent=0 // loop_header_branch
    %11 = sbr.rel (%p9) target = $region8
  $region5: #{discriminator_forward.3} parent=0 // loop_body
    %s13 = ssub.s32 %s8, 1
    %s14 = ssub.s32 %s8, 2
    %s15 = sadd.s32 %s8, 1
    %s16 = ssub.s32 %s8, %s15
    %p17 = scmp.eq.s32.totalorder %s16, 0
    %s19 = sadd.s32 %s18, 1
    %s20 = scalar_select %p17, %s18, %s19
    %p23 = pneg %p17
    %p24 = scmp.eq.s32.totalorder %s8, 3
    %p25 = por %p23, %p24
    %p26 = scmp.ne.s32.totalorder %s18, %s21
    %p27 = scmp.eq.s32.totalorder %s8, 0
    %p28 = por %p26, %p27
    %p29 = scmp.ne.s32.totalorder %s18, %s21
    %p30 = scmp.eq.s32.totalorder %s13, 3
    %p31 = por %p29, %p30
    %p32 = scmp.ne.s32.totalorder %s21, %s22
    %p33 = scmp.eq.s32.totalorder %s13, 0
    %p34 = por %p32, %p33
    %p35 = scmp.ne.s32.totalorder %s21, %s22
    %p36 = scmp.eq.s32.totalorder %s14, 3
    %p37 = por %p35, %p36
    %p39 = scmp.ne.s32.totalorder %s22, %s38
    %p40 = scmp.eq.s32.totalorder %s14, 0
    %p41 = por %p39, %p40
    %s43 = sadd.s32 %s42, 1
    %p46 = scmp.eq.s32.totalorder %s8, 3
    %p47 = scmp.ne.s32.totalorder %s42, %s44
    %p48 = scmp.eq.s32.totalorder %s8, 0
    %p49 = por %p47, %p48
    %p50 = scmp.ne.s32.totalorder %s42, %s44
    %p51 = scmp.eq.s32.totalorder %s13, 3
    %p52 = por %p50, %p51
    %p53 = scmp.ne.s32.totalorder %s44, %s45
    %p54 = scmp.eq.s32.totalorder %s13, 0
    %p55 = por %p53, %p54
    %p56 = scmp.ne.s32.totalorder %s44, %s45
    %p57 = scmp.eq.s32.totalorder %s14, 3
    %p58 = por %p56, %p57
    %p60 = scmp.ne.s32.totalorder %s45, %s59
    %p61 = scmp.eq.s32.totalorder %s14, 0
    %p62 = por %p60, %p61
    %s63 = ssub.s32 %s8, %s15
    %p64 = scmp.eq.s32.totalorder %s63, 0
    %s66 = sadd.s32 %s65, 1
    %s67 = scalar_select %p64, %s65, %s66
    %p70 = pneg %p64
    %p71 = scmp.eq.s32.totalorder %s8, 3
    %p72 = por %p70, %p71
    %p73 = scmp.ne.s32.totalorder %s65, %s68
    %p74 = scmp.eq.s32.totalorder %s8, 0
    %p75 = por %p73, %p74
    %p76 = scmp.ne.s32.totalorder %s65, %s68
    %p77 = scmp.eq.s32.totalorder %s13, 3
    %p78 = por %p76, %p77
    %p79 = scmp.ne.s32.totalorder %s68, %s69
    %p80 = scmp.eq.s32.totalorder %s13, 0
    %p81 = por %p79, %p80
    %p82 = scmp.ne.s32.totalorder %s68, %s69
    %p83 = scmp.eq.s32.totalorder %s14, 3
    %p84 = por %p82, %p83
    %p86 = scmp.ne.s32.totalorder %s69, %s85
    %p87 = scmp.eq.s32.totalorder %s14, 0
    %p88 = por %p86, %p87
    %p89 = scmp.le.s32.totalorder 1, %s8
    %p90 = scmp.lt.s32.totalorder %s8, 5
    %p91 = pnand %p89, %p90
    %p92 = pneg %p91
    // Predicated region
    $region9: #{discriminator_forward.3} parent=5 // pred_check
      _
    $region10: #{discriminator_forward.3} parent=5 // pred_check_branch
      %94 = sbr.rel (%p91) target = $region12
    $region11: #{discriminator_forward.3} parent=5 // pred_region
      %s95 = ssub.s32 %s8, 1
      // Predicated region
      $region13: #{discriminator_forward.3} parent=11 // pred_check
        %p96 = pneg %p55
      $region14: #{discriminator_forward.3} parent=11 // pred_check_branch
        %98 = sbr.rel (%p96) target = $region16
      $region15: #{discriminator_forward.3} parent=11 // pred_region
        _
      $region16: #{discriminator_forward.3} parent=11 // pred_fallthru
        _
    $region12: #{discriminator_forward.3} parent=5 // pred_fallthru
      _
    %p99 = scmp.lt.s32.totalorder %s8, 4
    // Predicated region
    $region17: #{discriminator_forward.3} parent=5 // pred_check
      %p100 = pneg %p99
    $region18: #{discriminator_forward.3} parent=5 // pred_check_branch
      %102 = sbr.rel (%p100) target = $region20
    $region19: #{discriminator_forward.3} parent=5 // pred_region
      // Predicated region
      $region21: #{discriminator_forward.3} parent=19 // pred_check
        %p103 = pneg %p28
      $region22: #{discriminator_forward.3} parent=19 // pred_check_branch
        %105 = sbr.rel (%p103) target = $region24
      $region23: #{discriminator_forward.3} parent=19 // pred_region
        %s106 = smul.u32 64, %s8
        %p107 = scmp.lt.s32.totalorder %s106, 255
        %s108 = scalar_select %p107, %s106, 255
        %s109 = smul.addr %s108, 8
        %s110 = scalar_lea.vmem %s0, %s109
        %s111 = smul.u32 64, %s8
      $region24: #{discriminator_forward.3} parent=19 // pred_fallthru
        _
    $region20: #{discriminator_forward.3} parent=5 // pred_fallthru
      _
    %p112 = scmp.le.s32.totalorder 1, %s8
    %p113 = scmp.lt.s32.totalorder %s8, 5
    %p114 = pnand %p112, %p113
    %p115 = pneg %p114
    // Predicated region
    $region25: #{discriminator_forward.3} parent=5 // pred_check
      _
    $region26: #{discriminator_forward.3} parent=5 // pred_check_branch
      %117 = sbr.rel (%p114) target = $region28
    $region27: #{discriminator_forward.3} parent=5 // pred_region
      %s118 = ssub.s32 %s8, 1
      %s119 = smul.u32 64, %s13
      %p120 = scmp.lt.s32.totalorder %s119, 255
      %s121 = scalar_select %p120, %s119, 255
      %s122 = smul.addr %s121, 8
      %s123 = scalar_lea.vmem %s0, %s122
      %p124 = pneg %p34
      %p125 = pneg %p31
      %p126 = pneg %p55
      %p127 = pneg %p52
      %p128 = pneg %p81
      %p129 = pneg %p78
      %s130 = smul.u32 64, %s13
      %p131 = scmp.lt.s32.totalorder %s130, 255
      %s132 = scalar_select %p131, %s130, 255
      %s133 = smul.addr %s132, 4
      %s134 = scalar_lea.vmem %s2, %s133
      %s135 = smul.u32 64, %s13
      %p136 = scmp.lt.s32.totalorder %s135, 255
      %s137 = scalar_select %p136, %s135, 255
      %s138 = smul.addr %s137, 8
      %s139 = scalar_lea.vmem %s0, %s138
      %s140 = smul.u32 64, %s13
      %s141 = smul.u32 64, %s13
      %p142 = scmp.lt.s32.totalorder %s141, 255
      %s143 = scalar_select %p142, %s141, 255
      %s144 = smul.addr %s143, 4
      %s145 = scalar_lea.vmem %s2, %s144
      %s146 = smul.u32 64, %s13
      %v148 = vld [vmem:[%s139] sm:$0xff]
      %v149 = vld [vmem:[%s139 + $0x8] sm:$0xff]
      %v150 = vld [vmem:[%s139 + $0x10] sm:$0xff]
      %v151 = vld [vmem:[%s139 + $0x18] sm:$0xff]
      %v152 = vld [vmem:[%s139 + $0x20] sm:$0xff]
      %v153 = vld [vmem:[%s139 + $0x28] sm:$0xff]
      %v154 = vld [vmem:[%s139 + $0x30] sm:$0xff]
      %v155 = vld [vmem:[%s139 + $0x38] sm:$0xff]
      %v156 = vld [vmem:[%s139 + $0x40] sm:$0xff]
      %v157 = vld [vmem:[%s139 + $0x48] sm:$0xff]
      %v158 = vld [vmem:[%s139 + $0x50] sm:$0xff]
      %v159 = vld [vmem:[%s139 + $0x58] sm:$0xff]
      %v160 = vld [vmem:[%s139 + $0x60] sm:$0xff]
      %v161 = vld [vmem:[%s139 + $0x68] sm:$0xff]
      %v162 = vld [vmem:[%s139 + $0x70] sm:$0xff]
      %v163 = vld [vmem:[%s139 + $0x78] sm:$0xff]
      %v164 = vld [vmem:[%s139 + $0x80] sm:$0xff]
      %v165 = vld [vmem:[%s139 + $0x88] sm:$0xff]
      %v166 = vld [vmem:[%s139 + $0x90] sm:$0xff]
      %v167 = vld [vmem:[%s139 + $0x98] sm:$0xff]
      %v168 = vld [vmem:[%s139 + $0xa0] sm:$0xff]
      %v169 = vld [vmem:[%s139 + $0xa8] sm:$0xff]
      %v170 = vld [vmem:[%s139 + $0xb0] sm:$0xff]
      %v171 = vld [vmem:[%s139 + $0xb8] sm:$0xff]
      %v172 = vld [vmem:[%s139 + $0xc0] sm:$0xff]
      %v173 = vld [vmem:[%s139 + $0xc8] sm:$0xff]
      %v174 = vld [vmem:[%s139 + $0xd0] sm:$0xff]
      %v175 = vld [vmem:[%s139 + $0xd8] sm:$0xff]
      %v176 = vld [vmem:[%s139 + $0xe0] sm:$0xff]
      %v177 = vld [vmem:[%s139 + $0xe8] sm:$0xff]
      %v178 = vld [vmem:[%s139 + $0xf0] sm:$0xff]
      %v179 = vld [vmem:[%s139 + $0xf8] sm:$0xff]
      %v180 = vld [vmem:[%s139 + $0x100] sm:$0xff]
      %v181 = vld [vmem:[%s139 + $0x108] sm:$0xff]
      %v182 = vld [vmem:[%s139 + $0x110] sm:$0xff]
      %v183 = vld [vmem:[%s139 + $0x118] sm:$0xff]
      %v184 = vld [vmem:[%s139 + $0x120] sm:$0xff]
      %v185 = vld [vmem:[%s139 + $0x128] sm:$0xff]
      %v186 = vld [vmem:[%s139 + $0x130] sm:$0xff]
      %v187 = vld [vmem:[%s139 + $0x138] sm:$0xff]
      %v188 = vld [vmem:[%s139 + $0x140] sm:$0xff]
      %v189 = vld [vmem:[%s139 + $0x148] sm:$0xff]
      %v190 = vld [vmem:[%s139 + $0x150] sm:$0xff]
      %v191 = vld [vmem:[%s139 + $0x158] sm:$0xff]
      %v192 = vld [vmem:[%s139 + $0x160] sm:$0xff]
      %v193 = vld [vmem:[%s139 + $0x168] sm:$0xff]
      %v194 = vld [vmem:[%s139 + $0x170] sm:$0xff]
      %v195 = vld [vmem:[%s139 + $0x178] sm:$0xff]
      %v196 = vld [vmem:[%s139 + $0x180] sm:$0xff]
      %v197 = vld [vmem:[%s139 + $0x188] sm:$0xff]
      %v198 = vld [vmem:[%s139 + $0x190] sm:$0xff]
      %v199 = vld [vmem:[%s139 + $0x198] sm:$0xff]
      %v200 = vld [vmem:[%s139 + $0x1a0] sm:$0xff]
      %v201 = vld [vmem:[%s139 + $0x1a8] sm:$0xff]
      %v202 = vld [vmem:[%s139 + $0x1b0] sm:$0xff]
      %v203 = vld [vmem:[%s139 + $0x1b8] sm:$0xff]
      %v204 = vld [vmem:[%s139 + $0x1c0] sm:$0xff]
      %v205 = vld [vmem:[%s139 + $0x1c8] sm:$0xff]
      %v206 = vld [vmem:[%s139 + $0x1d0] sm:$0xff]
      %v207 = vld [vmem:[%s139 + $0x1d8] sm:$0xff]
      %v208 = vld [vmem:[%s139 + $0x1e0] sm:$0xff]
      %v209 = vld [vmem:[%s139 + $0x1e8] sm:$0xff]
      %v210 = vld [vmem:[%s139 + $0x1f0] sm:$0xff]
      %v211 = vld [vmem:[%s139 + $0x1f8] sm:$0xff]
      %v212 = vpack.c.bf16 %v149, %v148
      %v213 = vpack.c.bf16 %v151, %v150
      %v214 = vpack.c.bf16 %v153, %v152
      %v215 = vpack.c.bf16 %v155, %v154
      %v216 = vpack.c.bf16 %v157, %v156
      %v217 = vpack.c.bf16 %v159, %v158
      %v218 = vpack.c.bf16 %v161, %v160
      %v219 = vpack.c.bf16 %v163, %v162
      %v220 = vpack.c.bf16 %v165, %v164
      %v221 = vpack.c.bf16 %v167, %v166
      %v222 = vpack.c.bf16 %v169, %v168
      %v223 = vpack.c.bf16 %v171, %v170
      %v224 = vpack.c.bf16 %v173, %v172
      %v225 = vpack.c.bf16 %v175, %v174
      %v226 = vpack.c.bf16 %v177, %v176
      %v227 = vpack.c.bf16 %v179, %v178
      %v228 = vpack.c.bf16 %v181, %v180
      %v229 = vpack.c.bf16 %v183, %v182
      %v230 = vpack.c.bf16 %v185, %v184
      %v231 = vpack.c.bf16 %v187, %v186
      %v232 = vpack.c.bf16 %v189, %v188
      %v233 = vpack.c.bf16 %v191, %v190
      %v234 = vpack.c.bf16 %v193, %v192
      %v235 = vpack.c.bf16 %v195, %v194
      %v236 = vpack.c.bf16 %v197, %v196
      %v237 = vpack.c.bf16 %v199, %v198
      %v238 = vpack.c.bf16 %v201, %v200
      %v239 = vpack.c.bf16 %v203, %v202
      %v240 = vpack.c.bf16 %v205, %v204
      %v241 = vpack.c.bf16 %v207, %v206
      %v242 = vpack.c.bf16 %v209, %v208
      %v243 = vpack.c.bf16 %v211, %v210
      %v244 = vld [vmem:[%s1] sm:$0xf]
      %v245 = vld [vmem:[%s1 + $0x4] sm:$0xf]
      %v248 = vunpack.c.l.b16 %v244
      %v249 = vunpack.c.l.b16 %v245
      %v250 = vpack.c.b16 %v249, %v248
      %vm252 = vcmask 130048
      %v254 = vsel %vm252, %v212, 0
      %v257 = vsel %vm252, %v213, 0
      %v260 = vsel %vm252, %v214, 0
      %v263 = vsel %vm252, %v215, 0
      %v266 = vsel %vm252, %v216, 0
      %v269 = vsel %vm252, %v217, 0
      %v272 = vsel %vm252, %v218, 0
      %v275 = vsel %vm252, %v219, 0
      %v278 = vsel %vm252, %v220, 0
      %v281 = vsel %vm252, %v221, 0
      %v284 = vsel %vm252, %v222, 0
      %v287 = vsel %vm252, %v223, 0
      %v290 = vsel %vm252, %v224, 0
      %v293 = vsel %vm252, %v225, 0
      %v296 = vsel %vm252, %v226, 0
      %v299 = vsel %vm252, %v227, 0
      %v302 = vsel %vm252, %v228, 0
      %v305 = vsel %vm252, %v229, 0
      %v308 = vsel %vm252, %v230, 0
      %v311 = vsel %vm252, %v231, 0
      %v314 = vsel %vm252, %v232, 0
      %v317 = vsel %vm252, %v233, 0
      %v320 = vsel %vm252, %v234, 0
      %v323 = vsel %vm252, %v235, 0
      %v326 = vsel %vm252, %v236, 0
      %v329 = vsel %vm252, %v237, 0
      %v332 = vsel %vm252, %v238, 0
      %v335 = vsel %vm252, %v239, 0
      %v338 = vsel %vm252, %v240, 0
      %v341 = vsel %vm252, %v241, 0
      %v344 = vsel %vm252, %v242, 0
      %v347 = vsel %vm252, %v243, 0
      %349 = vmatpush.bf16.msra.mxu0 0
      %350 = vmatpush.bf16.msra.mxu0 0
      %351 = vmatpush.bf16.msra.mxu0 0
      %352 = vmatpush.bf16.msra.mxu0 0
      %353 = vmatpush.bf16.msra.mxu0 0
      %354 = vmatpush.bf16.msra.mxu0 0
      %355 = vmatpush.bf16.msra.mxu0 0
      %356 = vmatpush.bf16.msra.mxu0 %v250
      %357 = vmatmul.bf16.gmra.mxu0 %v254
      %v358 = vpop.f32.mrf.mxu0
      %v359 = vadd.f32 0.0, %v358
      %v360 = vpop.f32.mrf.mxu0
      %v361 = vadd.f32 0.0, %v360
      %362 = vmatmul.bf16.gmra.mxu0 %v257
      %v363 = vpop.f32.mrf.mxu0
      %v364 = vadd.f32 0.0, %v363
      %v365 = vpop.f32.mrf.mxu0
      %v366 = vadd.f32 0.0, %v365
      %367 = vmatmul.bf16.gmra.mxu0 %v260
      %v368 = vpop.f32.mrf.mxu0
      %v369 = vadd.f32 0.0, %v368
      %v370 = vpop.f32.mrf.mxu0
      %v371 = vadd.f32 0.0, %v370
      %372 = vmatmul.bf16.gmra.mxu0 %v263
      %v373 = vpop.f32.mrf.mxu0
      %v374 = vadd.f32 0.0, %v373
      %v375 = vpop.f32.mrf.mxu0
      %v376 = vadd.f32 0.0, %v375
      %377 = vmatmul.bf16.gmra.mxu0 %v266
      %v378 = vpop.f32.mrf.mxu0
      %v379 = vadd.f32 0.0, %v378
      %v380 = vpop.f32.mrf.mxu0
      %v381 = vadd.f32 0.0, %v380
      %382 = vmatmul.bf16.gmra.mxu0 %v269
      %v383 = vpop.f32.mrf.mxu0
      %v384 = vadd.f32 0.0, %v383
      %v385 = vpop.f32.mrf.mxu0
      %v386 = vadd.f32 0.0, %v385
      %387 = vmatmul.bf16.gmra.mxu0 %v272
      %v388 = vpop.f32.mrf.mxu0
      %v389 = vadd.f32 0.0, %v388
      %v390 = vpop.f32.mrf.mxu0
      %v391 = vadd.f32 0.0, %v390
      %392 = vmatmul.bf16.gmra.mxu0 %v275
      %v393 = vpop.f32.mrf.mxu0
      %v394 = vadd.f32 0.0, %v393
      %v395 = vpop.f32.mrf.mxu0
      %v396 = vadd.f32 0.0, %v395
      %397 = vmatmul.bf16.gmra.mxu0 %v278
      %v398 = vpop.f32.mrf.mxu0
      %v399 = vadd.f32 0.0, %v398
      %v400 = vpop.f32.mrf.mxu0
      %v401 = vadd.f32 0.0, %v400
      %402 = vmatmul.bf16.gmra.mxu0 %v281
      %v403 = vpop.f32.mrf.mxu0
      %v404 = vadd.f32 0.0, %v403
      %v405 = vpop.f32.mrf.mxu0
      %v406 = vadd.f32 0.0, %v405
      %407 = vmatmul.bf16.gmra.mxu0 %v284
      %v408 = vpop.f32.mrf.mxu0
      %v409 = vadd.f32 0.0, %v408
      %v410 = vpop.f32.mrf.mxu0
      %v411 = vadd.f32 0.0, %v410
      %412 = vmatmul.bf16.gmra.mxu0 %v287
      %v413 = vpop.f32.mrf.mxu0
      %v414 = vadd.f32 0.0, %v413
      %v415 = vpop.f32.mrf.mxu0
      %v416 = vadd.f32 0.0, %v415
      %417 = vmatmul.bf16.gmra.mxu0 %v290
      %v418 = vpop.f32.mrf.mxu0
      %v419 = vadd.f32 0.0, %v418
      %v420 = vpop.f32.mrf.mxu0
      %v421 = vadd.f32 0.0, %v420
      %422 = vmatmul.bf16.gmra.mxu0 %v293
      %v423 = vpop.f32.mrf.mxu0
      %v424 = vadd.f32 0.0, %v423
      %v425 = vpop.f32.mrf.mxu0
      %v426 = vadd.f32 0.0, %v425
      %427 = vmatmul.bf16.gmra.mxu0 %v296
      %v428 = vpop.f32.mrf.mxu0
      %v429 = vadd.f32 0.0, %v428
      %v430 = vpop.f32.mrf.mxu0
      %v431 = vadd.f32 0.0, %v430
      %432 = vmatmul.bf16.gmra.mxu0 %v299
      %v433 = vpop.f32.mrf.mxu0
      %v434 = vadd.f32 0.0, %v433
      %v435 = vpop.f32.mrf.mxu0
      %v436 = vadd.f32 0.0, %v435
      %437 = vmatmul.bf16.gmra.mxu0 %v302
      %v438 = vpop.f32.mrf.mxu0
      %v439 = vadd.f32 0.0, %v438
      %v440 = vpop.f32.mrf.mxu0
      %v441 = vadd.f32 0.0, %v440
      %442 = vmatmul.bf16.gmra.mxu0 %v305
      %v443 = vpop.f32.mrf.mxu0
      %v444 = vadd.f32 0.0, %v443
      %v445 = vpop.f32.mrf.mxu0
      %v446 = vadd.f32 0.0, %v445
      %447 = vmatmul.bf16.gmra.mxu0 %v308
      %v448 = vpop.f32.mrf.mxu0
      %v449 = vadd.f32 0.0, %v448
      %v450 = vpop.f32.mrf.mxu0
      %v451 = vadd.f32 0.0, %v450
      %452 = vmatmul.bf16.gmra.mxu0 %v311
      %v453 = vpop.f32.mrf.mxu0
      %v454 = vadd.f32 0.0, %v453
      %v455 = vpop.f32.mrf.mxu0
      %v456 = vadd.f32 0.0, %v455
      %457 = vmatmul.bf16.gmra.mxu0 %v314
      %v458 = vpop.f32.mrf.mxu0
      %v459 = vadd.f32 0.0, %v458
      %v460 = vpop.f32.mrf.mxu0
      %v461 = vadd.f32 0.0, %v460
      %462 = vmatmul.bf16.gmra.mxu0 %v317
      %v463 = vpop.f32.mrf.mxu0
      %v464 = vadd.f32 0.0, %v463
      %v465 = vpop.f32.mrf.mxu0
      %v466 = vadd.f32 0.0, %v465
      %467 = vmatmul.bf16.gmra.mxu0 %v320
      %v468 = vpop.f32.mrf.mxu0
      %v469 = vadd.f32 0.0, %v468
      %v470 = vpop.f32.mrf.mxu0
      %v471 = vadd.f32 0.0, %v470
      %472 = vmatmul.bf16.gmra.mxu0 %v323
      %v473 = vpop.f32.mrf.mxu0
      %v474 = vadd.f32 0.0, %v473
      %v475 = vpop.f32.mrf.mxu0
      %v476 = vadd.f32 0.0, %v475
      %477 = vmatmul.bf16.gmra.mxu0 %v326
      %v478 = vpop.f32.mrf.mxu0
      %v479 = vadd.f32 0.0, %v478
      %v480 = vpop.f32.mrf.mxu0
      %v481 = vadd.f32 0.0, %v480
      %482 = vmatmul.bf16.gmra.mxu0 %v329
      %v483 = vpop.f32.mrf.mxu0
      %v484 = vadd.f32 0.0, %v483
      %v485 = vpop.f32.mrf.mxu0
      %v486 = vadd.f32 0.0, %v485
      %487 = vmatmul.bf16.gmra.mxu0 %v332
      %v488 = vpop.f32.mrf.mxu0
      %v489 = vadd.f32 0.0, %v488
      %v490 = vpop.f32.mrf.mxu0
      %v491 = vadd.f32 0.0, %v490
      %492 = vmatmul.bf16.gmra.mxu0 %v335
      %v493 = vpop.f32.mrf.mxu0
      %v494 = vadd.f32 0.0, %v493
      %v495 = vpop.f32.mrf.mxu0
      %v496 = vadd.f32 0.0, %v495
      %497 = vmatmul.bf16.gmra.mxu0 %v338
      %v498 = vpop.f32.mrf.mxu0
      %v499 = vadd.f32 0.0, %v498
      %v500 = vpop.f32.mrf.mxu0
      %v501 = vadd.f32 0.0, %v500
      %502 = vmatmul.bf16.gmra.mxu0 %v341
      %v503 = vpop.f32.mrf.mxu0
      %v504 = vadd.f32 0.0, %v503
      %v505 = vpop.f32.mrf.mxu0
      %v506 = vadd.f32 0.0, %v505
      %507 = vmatmul.bf16.gmra.mxu0 %v344
      %v508 = vpop.f32.mrf.mxu0
      %v509 = vadd.f32 0.0, %v508
      %v510 = vpop.f32.mrf.mxu0
      %v511 = vadd.f32 0.0, %v510
      %512 = vmatmul.bf16.gmra.mxu0 %v347
      %v513 = vpop.f32.mrf.mxu0
      %v514 = vadd.f32 0.0, %v513
      %v515 = vpop.f32.mrf.mxu0
      %v516 = vadd.f32 0.0, %v515
      %517 = vdwg.mxu0
      %v518 = vpack.c.bf16 %v359, %v359
      %v519 = vpack.c.bf16 %v361, %v361
      %v520 = vpack.c.bf16 %v364, %v364
      %v521 = vpack.c.bf16 %v366, %v366
      %v522 = vpack.c.bf16 %v369, %v369
      %v523 = vpack.c.bf16 %v371, %v371
      %v524 = vpack.c.bf16 %v374, %v374
      %v525 = vpack.c.bf16 %v376, %v376
      %v526 = vpack.c.bf16 %v379, %v379
      %v527 = vpack.c.bf16 %v381, %v381
      %v528 = vpack.c.bf16 %v384, %v384
      %v529 = vpack.c.bf16 %v386, %v386
      %v530 = vpack.c.bf16 %v389, %v389
      %v531 = vpack.c.bf16 %v391, %v391
      %v532 = vpack.c.bf16 %v394, %v394
      %v533 = vpack.c.bf16 %v396, %v396
      %v534 = vpack.c.bf16 %v399, %v399
      %v535 = vpack.c.bf16 %v401, %v401
      %v536 = vpack.c.bf16 %v404, %v404
      %v537 = vpack.c.bf16 %v406, %v406
      %v538 = vpack.c.bf16 %v409, %v409
      %v539 = vpack.c.bf16 %v411, %v411
      %v540 = vpack.c.bf16 %v414, %v414
      %v541 = vpack.c.bf16 %v416, %v416
      %v542 = vpack.c.bf16 %v419, %v419
      %v543 = vpack.c.bf16 %v421, %v421
      %v544 = vpack.c.bf16 %v424, %v424
      %v545 = vpack.c.bf16 %v426, %v426
      %v546 = vpack.c.bf16 %v429, %v429
      %v547 = vpack.c.bf16 %v431, %v431
      %v548 = vpack.c.bf16 %v434, %v434
      %v549 = vpack.c.bf16 %v436, %v436
      %v550 = vpack.c.bf16 %v439, %v439
      %v551 = vpack.c.bf16 %v441, %v441
      %v552 = vpack.c.bf16 %v444, %v444
      %v553 = vpack.c.bf16 %v446, %v446
      %v554 = vpack.c.bf16 %v449, %v449
      %v555 = vpack.c.bf16 %v451, %v451
      %v556 = vpack.c.bf16 %v454, %v454
      %v557 = vpack.c.bf16 %v456, %v456
      %v558 = vpack.c.bf16 %v459, %v459
      %v559 = vpack.c.bf16 %v461, %v461
      %v560 = vpack.c.bf16 %v464, %v464
      %v561 = vpack.c.bf16 %v466, %v466
      %v562 = vpack.c.bf16 %v469, %v469
      %v563 = vpack.c.bf16 %v471, %v471
      %v564 = vpack.c.bf16 %v474, %v474
      %v565 = vpack.c.bf16 %v476, %v476
      %v566 = vpack.c.bf16 %v479, %v479
      %v567 = vpack.c.bf16 %v481, %v481
      %v568 = vpack.c.bf16 %v484, %v484
      %v569 = vpack.c.bf16 %v486, %v486
      %v570 = vpack.c.bf16 %v489, %v489
      %v571 = vpack.c.bf16 %v491, %v491
      %v572 = vpack.c.bf16 %v494, %v494
      %v573 = vpack.c.bf16 %v496, %v496
      %v574 = vpack.c.bf16 %v499, %v499
      %v575 = vpack.c.bf16 %v501, %v501
      %v576 = vpack.c.bf16 %v504, %v504
      %v577 = vpack.c.bf16 %v506, %v506
      %v578 = vpack.c.bf16 %v509, %v509
      %v579 = vpack.c.bf16 %v511, %v511
      %v580 = vpack.c.bf16 %v514, %v514
      %v581 = vpack.c.bf16 %v516, %v516
      %582 = vst [vmem:[%s145] sm:$0xf] %v518
      %583 = vst [vmem:[%s145 + $0x4] sm:$0xf] %v519
      %584 = vst [vmem:[%s145 + $0x8] sm:$0xf] %v520
      %585 = vst [vmem:[%s145 + $0xc] sm:$0xf] %v521
      %586 = vst [vmem:[%s145 + $0x10] sm:$0xf] %v522
      %587 = vst [vmem:[%s145 + $0x14] sm:$0xf] %v523
      %588 = vst [vmem:[%s145 + $0x18] sm:$0xf] %v524
      %589 = vst [vmem:[%s145 + $0x1c] sm:$0xf] %v525
      %590 = vst [vmem:[%s145 + $0x20] sm:$0xf] %v526
      %591 = vst [vmem:[%s145 + $0x24] sm:$0xf] %v527
      %592 = vst [vmem:[%s145 + $0x28] sm:$0xf] %v528
      %593 = vst [vmem:[%s145 + $0x2c] sm:$0xf] %v529
      %594 = vst [vmem:[%s145 + $0x30] sm:$0xf] %v530
      %595 = vst [vmem:[%s145 + $0x34] sm:$0xf] %v531
      %596 = vst [vmem:[%s145 + $0x38] sm:$0xf] %v532
      %597 = vst [vmem:[%s145 + $0x3c] sm:$0xf] %v533
      %598 = vst [vmem:[%s145 + $0x40] sm:$0xf] %v534
      %599 = vst [vmem:[%s145 + $0x44] sm:$0xf] %v535
      %600 = vst [vmem:[%s145 + $0x48] sm:$0xf] %v536
      %601 = vst [vmem:[%s145 + $0x4c] sm:$0xf] %v537
      %602 = vst [vmem:[%s145 + $0x50] sm:$0xf] %v538
      %603 = vst [vmem:[%s145 + $0x54] sm:$0xf] %v539
      %604 = vst [vmem:[%s145 + $0x58] sm:$0xf] %v540
      %605 = vst [vmem:[%s145 + $0x5c] sm:$0xf] %v541
      %606 = vst [vmem:[%s145 + $0x60] sm:$0xf] %v542
      %607 = vst [vmem:[%s145 + $0x64] sm:$0xf] %v543
      %608 = vst [vmem:[%s145 + $0x68] sm:$0xf] %v544
      %609 = vst [vmem:[%s145 + $0x6c] sm:$0xf] %v545
      %610 = vst [vmem:[%s145 + $0x70] sm:$0xf] %v546
      %611 = vst [vmem:[%s145 + $0x74] sm:$0xf] %v547
      %612 = vst [vmem:[%s145 + $0x78] sm:$0xf] %v548
      %613 = vst [vmem:[%s145 + $0x7c] sm:$0xf] %v549
      %614 = vst [vmem:[%s145 + $0x80] sm:$0xf] %v550
      %615 = vst [vmem:[%s145 + $0x84] sm:$0xf] %v551
      %616 = vst [vmem:[%s145 + $0x88] sm:$0xf] %v552
      %617 = vst [vmem:[%s145 + $0x8c] sm:$0xf] %v553
      %618 = vst [vmem:[%s145 + $0x90] sm:$0xf] %v554
      %619 = vst [vmem:[%s145 + $0x94] sm:$0xf] %v555
      %620 = vst [vmem:[%s145 + $0x98] sm:$0xf] %v556
      %621 = vst [vmem:[%s145 + $0x9c] sm:$0xf] %v557
      %622 = vst [vmem:[%s145 + $0xa0] sm:$0xf] %v558
      %623 = vst [vmem:[%s145 + $0xa4] sm:$0xf] %v559
      %624 = vst [vmem:[%s145 + $0xa8] sm:$0xf] %v560
      %625 = vst [vmem:[%s145 + $0xac] sm:$0xf] %v561
      %626 = vst [vmem:[%s145 + $0xb0] sm:$0xf] %v562
      %627 = vst [vmem:[%s145 + $0xb4] sm:$0xf] %v563
      %628 = vst [vmem:[%s145 + $0xb8] sm:$0xf] %v564
      %629 = vst [vmem:[%s145 + $0xbc] sm:$0xf] %v565
      %630 = vst [vmem:[%s145 + $0xc0] sm:$0xf] %v566
      %631 = vst [vmem:[%s145 + $0xc4] sm:$0xf] %v567
      %632 = vst [vmem:[%s145 + $0xc8] sm:$0xf] %v568
      %633 = vst [vmem:[%s145 + $0xcc] sm:$0xf] %v569
      %634 = vst [vmem:[%s145 + $0xd0] sm:$0xf] %v570
      %635 = vst [vmem:[%s145 + $0xd4] sm:$0xf] %v571
      %636 = vst [vmem:[%s145 + $0xd8] sm:$0xf] %v572
      %637 = vst [vmem:[%s145 + $0xdc] sm:$0xf] %v573
      %638 = vst [vmem:[%s145 + $0xe0] sm:$0xf] %v574
      %639 = vst [vmem:[%s145 + $0xe4] sm:$0xf] %v575
      %640 = vst [vmem:[%s145 + $0xe8] sm:$0xf] %v576
      %641 = vst [vmem:[%s145 + $0xec] sm:$0xf] %v577
      %642 = vst [vmem:[%s145 + $0xf0] sm:$0xf] %v578
      %643 = vst [vmem:[%s145 + $0xf4] sm:$0xf] %v579
      %644 = vst [vmem:[%s145 + $0xf8] sm:$0xf] %v580
      %645 = vst [vmem:[%s145 + $0xfc] sm:$0xf] %v581
      %s646 = smul.u32 64, %s13
      %p647 = scmp.lt.s32.totalorder %s646, 255
      %s648 = scalar_select %p647, %s646, 255
      %s649 = smul.addr %s648, 4
      %s650 = scalar_lea.vmem %s2, %s649
      // Predicated region
      $region29: #{discriminator_forward.3} parent=27 // pred_check
        %p651 = pneg %p78
      $region30: #{discriminator_forward.3} parent=27 // pred_check_branch
        %653 = sbr.rel (%p651) target = $region32
      $region31: #{discriminator_forward.3} parent=27 // pred_region
        %s654 = smul.u32 64, %s13
      $region32: #{discriminator_forward.3} parent=27 // pred_fallthru
        _
    $region28: #{discriminator_forward.3} parent=5 // pred_fallthru
      _
    %p655 = scmp.le.s32.totalorder 2, %s8
    // Predicated region
    $region33: #{discriminator_forward.3} parent=5 // pred_check
      %p656 = pneg %p655
    $region34: #{discriminator_forward.3} parent=5 // pred_check_branch
      %658 = sbr.rel (%p656) target = $region36
    $region35: #{discriminator_forward.3} parent=5 // pred_region
      %s659 = ssub.s32 %s8, 2
      // Predicated region
      $region37: #{discriminator_forward.3} parent=35 // pred_check
        %p660 = pneg %p84
      $region38: #{discriminator_forward.3} parent=35 // pred_check_branch
        %662 = sbr.rel (%p660) target = $region40
      $region39: #{discriminator_forward.3} parent=35 // pred_region
        %s663 = smul.u32 64, %s14
        %p664 = scmp.lt.s32.totalorder %s663, 255
        %s665 = scalar_select %p664, %s663, 255
        %s666 = smul.addr %s665, 4
        %s667 = scalar_lea.vmem %s2, %s666
      $region40: #{discriminator_forward.3} parent=35 // pred_fallthru
        _
    $region36: #{discriminator_forward.3} parent=5 // pred_fallthru
      _
  $region6: #{discriminator_forward.3} parent=0 // loop_footer
    %s12 = sadd.s32 1, %s8
  $region7: #{discriminator_forward.3} parent=0 // loop_footer_branch
    %7 = sbr.rel target = $region3
  $region8: #{discriminator_forward.3} parent=0 // loop_exit
    _

// kernel: discriminator_forward.4
$region0: #{discriminator_forward.4}
  #allocation0 [shape = 'u32[]', space=smem, size = 0x4, offset = 0x4, fixed_abs, tag = 'smem constant byte address 0x4 - core index']
  #allocation1 [shape = 'u32[72,128]{1,0:T(1,128)}', space=vmem, size = 0x9000, scoped, tag = 'internal scratch']
  %s0 = inlined_call_operand.vmem [shape: bf16[512,256], index: 0, kind: input, shape index: {}]
  %s1 = inlined_call_operand.vmem [shape: bf16[256,128], index: 1, kind: input, shape index: {}]
  %s2 = inlined_call_operand.vmem [shape: bf16[512,128], index: 2, kind: output, shape index: {}]
  %s3 = sld [smem:[#allocation0]]
  $region41: #{discriminator_forward.4} parent=0
    _
  %s5 = ssub.s32 1, %s3
  %s6 = scalar_select 0, %s5, %s3
  loop: start=0, step=1, limit=4
  $region2: #{discriminator_forward.4} parent=0 // loop_pre_header
    _
  $region3: #{discriminator_forward.4} parent=0 // loop_header
    %s8 = sphi 0, %s12
    %p9 = scmp.ge.s32.totalorder %s8, 4
    %s18 = sphi 0, %s20
    %s21 = sphi 0, %s18
    %s22 = sphi 0, %s21
    %s38 = sphi 0, %s22
    %s42 = sphi 0, %s42
    %s44 = sphi 0, %s42
    %s45 = sphi 0, %s44
    %s59 = sphi 0, %s45
    %s65 = sphi 0, %s67
    %s68 = sphi 0, %s65
    %s69 = sphi 0, %s68
    %s85 = sphi 0, %s69
  $region4: #{discriminator_forward.4} parent=0 // loop_header_branch
    %11 = sbr.rel (%p9) target = $region8
  $region5: #{discriminator_forward.4} parent=0 // loop_body
    %s13 = ssub.s32 %s8, 1
    %s14 = ssub.s32 %s8, 2
    %s15 = sadd.s32 %s8, 1
    %s16 = ssub.s32 %s8, %s15
    %p17 = scmp.eq.s32.totalorder %s16, 0
    %s19 = sadd.s32 %s18, 1
    %s20 = scalar_select %p17, %s18, %s19
    %p23 = pneg %p17
    %p24 = scmp.eq.s32.totalorder %s8, 1
    %p25 = por %p23, %p24
    %p26 = scmp.ne.s32.totalorder %s18, %s21
    %p27 = scmp.eq.s32.totalorder %s8, 0
    %p28 = por %p26, %p27
    %p29 = scmp.ne.s32.totalorder %s18, %s21
    %p30 = scmp.eq.s32.totalorder %s13, 1
    %p31 = por %p29, %p30
    %p32 = scmp.ne.s32.totalorder %s21, %s22
    %p33 = scmp.eq.s32.totalorder %s13, 0
    %p34 = por %p32, %p33
    %p35 = scmp.ne.s32.totalorder %s21, %s22
    %p36 = scmp.eq.s32.totalorder %s14, 1
    %p37 = por %p35, %p36
    %p39 = scmp.ne.s32.totalorder %s22, %s38
    %p40 = scmp.eq.s32.totalorder %s14, 0
    %p41 = por %p39, %p40
    %s43 = sadd.s32 %s42, 1
    %p46 = scmp.eq.s32.totalorder %s8, 1
    %p47 = scmp.ne.s32.totalorder %s42, %s44
    %p48 = scmp.eq.s32.totalorder %s8, 0
    %p49 = por %p47, %p48
    %p50 = scmp.ne.s32.totalorder %s42, %s44
    %p51 = scmp.eq.s32.totalorder %s13, 1
    %p52 = por %p50, %p51
    %p53 = scmp.ne.s32.totalorder %s44, %s45
    %p54 = scmp.eq.s32.totalorder %s13, 0
    %p55 = por %p53, %p54
    %p56 = scmp.ne.s32.totalorder %s44, %s45
    %p57 = scmp.eq.s32.totalorder %s14, 1
    %p58 = por %p56, %p57
    %p60 = scmp.ne.s32.totalorder %s45, %s59
    %p61 = scmp.eq.s32.totalorder %s14, 0
    %p62 = por %p60, %p61
    %s63 = ssub.s32 %s8, %s15
    %p64 = scmp.eq.s32.totalorder %s63, 0
    %s66 = sadd.s32 %s65, 1
    %s67 = scalar_select %p64, %s65, %s66
    %p70 = pneg %p64
    %p71 = scmp.eq.s32.totalorder %s8, 1
    %p72 = por %p70, %p71
    %p73 = scmp.ne.s32.totalorder %s65, %s68
    %p74 = scmp.eq.s32.totalorder %s8, 0
    %p75 = por %p73, %p74
    %p76 = scmp.ne.s32.totalorder %s65, %s68
    %p77 = scmp.eq.s32.totalorder %s13, 1
    %p78 = por %p76, %p77
    %p79 = scmp.ne.s32.totalorder %s68, %s69
    %p80 = scmp.eq.s32.totalorder %s13, 0
    %p81 = por %p79, %p80
    %p82 = scmp.ne.s32.totalorder %s68, %s69
    %p83 = scmp.eq.s32.totalorder %s14, 1
    %p84 = por %p82, %p83
    %p86 = scmp.ne.s32.totalorder %s69, %s85
    %p87 = scmp.eq.s32.totalorder %s14, 0
    %p88 = por %p86, %p87
    %p89 = scmp.le.s32.totalorder 1, %s8
    %p90 = scmp.lt.s32.totalorder %s8, 3
    %p91 = pnand %p89, %p90
    %p92 = pneg %p91
    // Predicated region
    $region9: #{discriminator_forward.4} parent=5 // pred_check
      _
    $region10: #{discriminator_forward.4} parent=5 // pred_check_branch
      %94 = sbr.rel (%p91) target = $region12
    $region11: #{discriminator_forward.4} parent=5 // pred_region
      %s95 = ssub.s32 %s8, 1
      // Predicated region
      $region13: #{discriminator_forward.4} parent=11 // pred_check
        %p96 = pneg %p55
      $region14: #{discriminator_forward.4} parent=11 // pred_check_branch
        %98 = sbr.rel (%p96) target = $region16
      $region15: #{discriminator_forward.4} parent=11 // pred_region
        _
      $region16: #{discriminator_forward.4} parent=11 // pred_fallthru
        _
    $region12: #{discriminator_forward.4} parent=5 // pred_fallthru
      _
    %p99 = scmp.lt.s32.totalorder %s8, 2
    // Predicated region
    $region17: #{discriminator_forward.4} parent=5 // pred_check
      %p100 = pneg %p99
    $region18: #{discriminator_forward.4} parent=5 // pred_check_branch
      %102 = sbr.rel (%p100) target = $region20
    $region19: #{discriminator_forward.4} parent=5 // pred_region
      // Predicated region
      $region21: #{discriminator_forward.4} parent=19 // pred_check
        %p103 = pneg %p28
      $region22: #{discriminator_forward.4} parent=19 // pred_check_branch
        %105 = sbr.rel (%p103) target = $region24
      $region23: #{discriminator_forward.4} parent=19 // pred_region
        %s106 = smul.u32 32, %s8
        %p107 = scmp.lt.s32.totalorder %s106, 63
        %s108 = scalar_select %p107, %s106, 63
        %s109 = smul.addr %s108, 2
        %s110 = smul.addr %s109, 4
        %s111 = scalar_lea.vmem %s0, %s110
        %s112 = smul.u32 32, %s8
      $region24: #{discriminator_forward.4} parent=19 // pred_fallthru
        _
    $region20: #{discriminator_forward.4} parent=5 // pred_fallthru
      _
    %p113 = scmp.le.s32.totalorder 1, %s8
    %p114 = scmp.lt.s32.totalorder %s8, 3
    %p115 = pnand %p113, %p114
    %p116 = pneg %p115
    // Predicated region
    $region25: #{discriminator_forward.4} parent=5 // pred_check
      _
    $region26: #{discriminator_forward.4} parent=5 // pred_check_branch
      %118 = sbr.rel (%p115) target = $region28
    $region27: #{discriminator_forward.4} parent=5 // pred_region
      %s119 = ssub.s32 %s8, 1
      %s120 = smul.u32 32, %s13
      %p121 = scmp.lt.s32.totalorder %s120, 63
      %s122 = scalar_select %p121, %s120, 63
      %s123 = smul.addr %s122, 2
      %s124 = smul.addr %s123, 4
      %s125 = scalar_lea.vmem %s0, %s124
      %p126 = pneg %p34
      %p127 = pneg %p31
      %p128 = pneg %p55
      %p129 = pneg %p52
      %p130 = pneg %p81
      %p131 = pneg %p78
      %s132 = smul.u32 32, %s13
      %p133 = scmp.lt.s32.totalorder %s132, 63
      %s134 = scalar_select %p133, %s132, 63
      %s135 = smul.addr %s134, 4
      %s136 = scalar_lea.vmem %s2, %s135
      %s137 = smul.u32 32, %s13
      %p138 = scmp.lt.s32.totalorder %s137, 63
      %s139 = scalar_select %p138, %s137, 63
      %s140 = smul.addr %s139, 2
      %s141 = smul.addr %s140, 4
      %s142 = scalar_lea.vmem %s0, %s141
      %s143 = smul.u32 32, %s13
      %s144 = smul.u32 32, %s13
      %p145 = scmp.lt.s32.totalorder %s144, 63
      %s146 = scalar_select %p145, %s144, 63
      %s147 = smul.addr %s146, 4
      %s148 = scalar_lea.vmem %s2, %s147
      %s149 = smul.u32 32, %s13
      %v150 = vld [vmem:[%s142] sm:$0xff]
      %v151 = vld [vmem:[%s142 + $0x8] sm:$0xff]
      %v152 = vld [vmem:[%s142 + $0x10] sm:$0xff]
      %v153 = vld [vmem:[%s142 + $0x18] sm:$0xff]
      %v154 = vld [vmem:[%s142 + $0x20] sm:$0xff]
      %v155 = vld [vmem:[%s142 + $0x28] sm:$0xff]
      %v156 = vld [vmem:[%s142 + $0x30] sm:$0xff]
      %v157 = vld [vmem:[%s142 + $0x38] sm:$0xff]
      %v158 = vld [vmem:[%s142 + $0x40] sm:$0xff]
      %v159 = vld [vmem:[%s142 + $0x48] sm:$0xff]
      %v160 = vld [vmem:[%s142 + $0x50] sm:$0xff]
      %v161 = vld [vmem:[%s142 + $0x58] sm:$0xff]
      %v162 = vld [vmem:[%s142 + $0x60] sm:$0xff]
      %v163 = vld [vmem:[%s142 + $0x68] sm:$0xff]
      %v164 = vld [vmem:[%s142 + $0x70] sm:$0xff]
      %v165 = vld [vmem:[%s142 + $0x78] sm:$0xff]
      %v166 = vld [vmem:[%s142 + $0x80] sm:$0xff]
      %v167 = vld [vmem:[%s142 + $0x88] sm:$0xff]
      %v168 = vld [vmem:[%s142 + $0x90] sm:$0xff]
      %v169 = vld [vmem:[%s142 + $0x98] sm:$0xff]
      %v170 = vld [vmem:[%s142 + $0xa0] sm:$0xff]
      %v171 = vld [vmem:[%s142 + $0xa8] sm:$0xff]
      %v172 = vld [vmem:[%s142 + $0xb0] sm:$0xff]
      %v173 = vld [vmem:[%s142 + $0xb8] sm:$0xff]
      %v174 = vld [vmem:[%s142 + $0xc0] sm:$0xff]
      %v175 = vld [vmem:[%s142 + $0xc8] sm:$0xff]
      %v176 = vld [vmem:[%s142 + $0xd0] sm:$0xff]
      %v177 = vld [vmem:[%s142 + $0xd8] sm:$0xff]
      %v178 = vld [vmem:[%s142 + $0xe0] sm:$0xff]
      %v179 = vld [vmem:[%s142 + $0xe8] sm:$0xff]
      %v180 = vld [vmem:[%s142 + $0xf0] sm:$0xff]
      %v181 = vld [vmem:[%s142 + $0xf8] sm:$0xff]
      %v182 = vunpack.c.l.bf16 %v150
      %v183 = vunpack.c.h.bf16 %v150
      %v184 = vunpack.c.l.bf16 %v151
      %v185 = vunpack.c.h.bf16 %v151
      %v186 = vunpack.c.l.bf16 %v152
      %v187 = vunpack.c.h.bf16 %v152
      %v188 = vunpack.c.l.bf16 %v153
      %v189 = vunpack.c.h.bf16 %v153
      %v190 = vunpack.c.l.bf16 %v154
      %v191 = vunpack.c.h.bf16 %v154
      %v192 = vunpack.c.l.bf16 %v155
      %v193 = vunpack.c.h.bf16 %v155
      %v194 = vunpack.c.l.bf16 %v156
      %v195 = vunpack.c.h.bf16 %v156
      %v196 = vunpack.c.l.bf16 %v157
      %v197 = vunpack.c.h.bf16 %v157
      %v198 = vunpack.c.l.bf16 %v158
      %v199 = vunpack.c.h.bf16 %v158
      %v200 = vunpack.c.l.bf16 %v159
      %v201 = vunpack.c.h.bf16 %v159
      %v202 = vunpack.c.l.bf16 %v160
      %v203 = vunpack.c.h.bf16 %v160
      %v204 = vunpack.c.l.bf16 %v161
      %v205 = vunpack.c.h.bf16 %v161
      %v206 = vunpack.c.l.bf16 %v162
      %v207 = vunpack.c.h.bf16 %v162
      %v208 = vunpack.c.l.bf16 %v163
      %v209 = vunpack.c.h.bf16 %v163
      %v210 = vunpack.c.l.bf16 %v164
      %v211 = vunpack.c.h.bf16 %v164
      %v212 = vunpack.c.l.bf16 %v165
      %v213 = vunpack.c.h.bf16 %v165
      %v214 = vunpack.c.l.bf16 %v166
      %v215 = vunpack.c.h.bf16 %v166
      %v216 = vunpack.c.l.bf16 %v167
      %v217 = vunpack.c.h.bf16 %v167
      %v218 = vunpack.c.l.bf16 %v168
      %v219 = vunpack.c.h.bf16 %v168
      %v220 = vunpack.c.l.bf16 %v169
      %v221 = vunpack.c.h.bf16 %v169
      %v222 = vunpack.c.l.bf16 %v170
      %v223 = vunpack.c.h.bf16 %v170
      %v224 = vunpack.c.l.bf16 %v171
      %v225 = vunpack.c.h.bf16 %v171
      %v226 = vunpack.c.l.bf16 %v172
      %v227 = vunpack.c.h.bf16 %v172
      %v228 = vunpack.c.l.bf16 %v173
      %v229 = vunpack.c.h.bf16 %v173
      %v230 = vunpack.c.l.bf16 %v174
      %v231 = vunpack.c.h.bf16 %v174
      %v232 = vunpack.c.l.bf16 %v175
      %v233 = vunpack.c.h.bf16 %v175
      %v234 = vunpack.c.l.bf16 %v176
      %v235 = vunpack.c.h.bf16 %v176
      %v236 = vunpack.c.l.bf16 %v177
      %v237 = vunpack.c.h.bf16 %v177
      %v238 = vunpack.c.l.bf16 %v178
      %v239 = vunpack.c.h.bf16 %v178
      %v240 = vunpack.c.l.bf16 %v179
      %v241 = vunpack.c.h.bf16 %v179
      %v242 = vunpack.c.l.bf16 %v180
      %v243 = vunpack.c.h.bf16 %v180
      %v244 = vunpack.c.l.bf16 %v181
      %v245 = vunpack.c.h.bf16 %v181
      %vm246 = vcmp.ge.f32.partialorder %v182, 0.0
      %vm247 = vcmp.ge.f32.partialorder %v183, 0.0
      %vm248 = vcmp.ge.f32.partialorder %v184, 0.0
      %vm249 = vcmp.ge.f32.partialorder %v185, 0.0
      %vm250 = vcmp.ge.f32.partialorder %v186, 0.0
      %vm251 = vcmp.ge.f32.partialorder %v187, 0.0
      %vm252 = vcmp.ge.f32.partialorder %v188, 0.0
      %vm253 = vcmp.ge.f32.partialorder %v189, 0.0
      %vm254 = vcmp.ge.f32.partialorder %v190, 0.0
      %vm255 = vcmp.ge.f32.partialorder %v191, 0.0
      %vm256 = vcmp.ge.f32.partialorder %v192, 0.0
      %vm257 = vcmp.ge.f32.partialorder %v193, 0.0
      %vm258 = vcmp.ge.f32.partialorder %v194, 0.0
      %vm259 = vcmp.ge.f32.partialorder %v195, 0.0
      %vm260 = vcmp.ge.f32.partialorder %v196, 0.0
      %vm261 = vcmp.ge.f32.partialorder %v197, 0.0
      %vm262 = vcmp.ge.f32.partialorder %v198, 0.0
      %vm263 = vcmp.ge.f32.partialorder %v199, 0.0
      %vm264 = vcmp.ge.f32.partialorder %v200, 0.0
      %vm265 = vcmp.ge.f32.partialorder %v201, 0.0
      %vm266 = vcmp.ge.f32.partialorder %v202, 0.0
      %vm267 = vcmp.ge.f32.partialorder %v203, 0.0
      %vm268 = vcmp.ge.f32.partialorder %v204, 0.0
      %vm269 = vcmp.ge.f32.partialorder %v205, 0.0
      %vm270 = vcmp.ge.f32.partialorder %v206, 0.0
      %vm271 = vcmp.ge.f32.partialorder %v207, 0.0
      %vm272 = vcmp.ge.f32.partialorder %v208, 0.0
      %vm273 = vcmp.ge.f32.partialorder %v209, 0.0
      %vm274 = vcmp.ge.f32.partialorder %v210, 0.0
      %vm275 = vcmp.ge.f32.partialorder %v211, 0.0
      %vm276 = vcmp.ge.f32.partialorder %v212, 0.0
      %vm277 = vcmp.ge.f32.partialorder %v213, 0.0
      %vm278 = vcmp.ge.f32.partialorder %v214, 0.0
      %vm279 = vcmp.ge.f32.partialorder %v215, 0.0
      %vm280 = vcmp.ge.f32.partialorder %v216, 0.0
      %vm281 = vcmp.ge.f32.partialorder %v217, 0.0
      %vm282 = vcmp.ge.f32.partialorder %v218, 0.0
      %vm283 = vcmp.ge.f32.partialorder %v219, 0.0
      %vm284 = vcmp.ge.f32.partialorder %v220, 0.0
      %vm285 = vcmp.ge.f32.partialorder %v221, 0.0
      %vm286 = vcmp.ge.f32.partialorder %v222, 0.0
      %vm287 = vcmp.ge.f32.partialorder %v223, 0.0
      %vm288 = vcmp.ge.f32.partialorder %v224, 0.0
      %vm289 = vcmp.ge.f32.partialorder %v225, 0.0
      %vm290 = vcmp.ge.f32.partialorder %v226, 0.0
      %vm291 = vcmp.ge.f32.partialorder %v227, 0.0
      %vm292 = vcmp.ge.f32.partialorder %v228, 0.0
      %vm293 = vcmp.ge.f32.partialorder %v229, 0.0
      %vm294 = vcmp.ge.f32.partialorder %v230, 0.0
      %vm295 = vcmp.ge.f32.partialorder %v231, 0.0
      %vm296 = vcmp.ge.f32.partialorder %v232, 0.0
      %vm297 = vcmp.ge.f32.partialorder %v233, 0.0
      %vm298 = vcmp.ge.f32.partialorder %v234, 0.0
      %vm299 = vcmp.ge.f32.partialorder %v235, 0.0
      %vm300 = vcmp.ge.f32.partialorder %v236, 0.0
      %vm301 = vcmp.ge.f32.partialorder %v237, 0.0
      %vm302 = vcmp.ge.f32.partialorder %v238, 0.0
      %vm303 = vcmp.ge.f32.partialorder %v239, 0.0
      %vm304 = vcmp.ge.f32.partialorder %v240, 0.0
      %vm305 = vcmp.ge.f32.partialorder %v241, 0.0
      %vm306 = vcmp.ge.f32.partialorder %v242, 0.0
      %vm307 = vcmp.ge.f32.partialorder %v243, 0.0
      %vm308 = vcmp.ge.f32.partialorder %v244, 0.0
      %vm309 = vcmp.ge.f32.partialorder %v245, 0.0
      %v310 = vmul.f32 %v182, 0.20019531
      %v311 = vmul.f32 %v183, 0.20019531
      %v312 = vmul.f32 %v184, 0.20019531
      %v313 = vmul.f32 %v185, 0.20019531
      %v314 = vmul.f32 %v186, 0.20019531
      %v315 = vmul.f32 %v187, 0.20019531
      %v316 = vmul.f32 %v188, 0.20019531
      %v317 = vmul.f32 %v189, 0.20019531
      %v318 = vmul.f32 %v190, 0.20019531
      %v319 = vmul.f32 %v191, 0.20019531
      %v320 = vmul.f32 %v192, 0.20019531
      %v321 = vmul.f32 %v193, 0.20019531
      %v322 = vmul.f32 %v194, 0.20019531
      %v323 = vmul.f32 %v195, 0.20019531
      %v324 = vmul.f32 %v196, 0.20019531
      %v325 = vmul.f32 %v197, 0.20019531
      %v326 = vmul.f32 %v198, 0.20019531
      %v327 = vmul.f32 %v199, 0.20019531
      %v328 = vmul.f32 %v200, 0.20019531
      %v329 = vmul.f32 %v201, 0.20019531
      %v330 = vmul.f32 %v202, 0.20019531
      %v331 = vmul.f32 %v203, 0.20019531
      %v332 = vmul.f32 %v204, 0.20019531
      %v333 = vmul.f32 %v205, 0.20019531
      %v334 = vmul.f32 %v206, 0.20019531
      %v335 = vmul.f32 %v207, 0.20019531
      %v336 = vmul.f32 %v208, 0.20019531
      %v337 = vmul.f32 %v209, 0.20019531
      %v338 = vmul.f32 %v210, 0.20019531
      %v339 = vmul.f32 %v211, 0.20019531
      %v340 = vmul.f32 %v212, 0.20019531
      %v341 = vmul.f32 %v213, 0.20019531
      %v342 = vmul.f32 %v214, 0.20019531
      %v343 = vmul.f32 %v215, 0.20019531
      %v344 = vmul.f32 %v216, 0.20019531
      %v345 = vmul.f32 %v217, 0.20019531
      %v346 = vmul.f32 %v218, 0.20019531
      %v347 = vmul.f32 %v219, 0.20019531
      %v348 = vmul.f32 %v220, 0.20019531
      %v349 = vmul.f32 %v221, 0.20019531
      %v350 = vmul.f32 %v222, 0.20019531
      %v351 = vmul.f32 %v223, 0.20019531
      %v352 = vmul.f32 %v224, 0.20019531
      %v353 = vmul.f32 %v225, 0.20019531
      %v354 = vmul.f32 %v226, 0.20019531
      %v355 = vmul.f32 %v227, 0.20019531
      %v356 = vmul.f32 %v228, 0.20019531
      %v357 = vmul.f32 %v229, 0.20019531
      %v358 = vmul.f32 %v230, 0.20019531
      %v359 = vmul.f32 %v231, 0.20019531
      %v360 = vmul.f32 %v232, 0.20019531
      %v361 = vmul.f32 %v233, 0.20019531
      %v362 = vmul.f32 %v234, 0.20019531
      %v363 = vmul.f32 %v235, 0.20019531
      %v364 = vmul.f32 %v236, 0.20019531
      %v365 = vmul.f32 %v237, 0.20019531
      %v366 = vmul.f32 %v238, 0.20019531
      %v367 = vmul.f32 %v239, 0.20019531
      %v368 = vmul.f32 %v240, 0.20019531
      %v369 = vmul.f32 %v241, 0.20019531
      %v370 = vmul.f32 %v242, 0.20019531
      %v371 = vmul.f32 %v243, 0.20019531
      %v372 = vmul.f32 %v244, 0.20019531
      %v373 = vmul.f32 %v245, 0.20019531
      %v374 = vpack.c.bf16 %v311, %v310
      %v375 = vpack.c.bf16 %v313, %v312
      %v376 = vpack.c.bf16 %v315, %v314
      %v377 = vpack.c.bf16 %v317, %v316
      %v378 = vpack.c.bf16 %v319, %v318
      %v379 = vpack.c.bf16 %v321, %v320
      %v380 = vpack.c.bf16 %v323, %v322
      %v381 = vpack.c.bf16 %v325, %v324
      %v382 = vpack.c.bf16 %v327, %v326
      %v383 = vpack.c.bf16 %v329, %v328
      %v384 = vpack.c.bf16 %v331, %v330
      %v385 = vpack.c.bf16 %v333, %v332
      %v386 = vpack.c.bf16 %v335, %v334
      %v387 = vpack.c.bf16 %v337, %v336
      %v388 = vpack.c.bf16 %v339, %v338
      %v389 = vpack.c.bf16 %v341, %v340
      %v390 = vpack.c.bf16 %v343, %v342
      %v391 = vpack.c.bf16 %v345, %v344
      %v392 = vpack.c.bf16 %v347, %v346
      %v393 = vpack.c.bf16 %v349, %v348
      %v394 = vpack.c.bf16 %v351, %v350
      %v395 = vpack.c.bf16 %v353, %v352
      %v396 = vpack.c.bf16 %v355, %v354
      %v397 = vpack.c.bf16 %v357, %v356
      %v398 = vpack.c.bf16 %v359, %v358
      %v399 = vpack.c.bf16 %v361, %v360
      %v400 = vpack.c.bf16 %v363, %v362
      %v401 = vpack.c.bf16 %v365, %v364
      %v402 = vpack.c.bf16 %v367, %v366
      %v403 = vpack.c.bf16 %v369, %v368
      %v404 = vpack.c.bf16 %v371, %v370
      %v405 = vpack.c.bf16 %v373, %v372
      %vm406 = vmpackc.low %vm247, %vm246
      %vm407 = vmpackc.low %vm249, %vm248
      %vm408 = vmpackc.low %vm251, %vm250
      %vm409 = vmpackc.low %vm253, %vm252
      %vm410 = vmpackc.low %vm255, %vm254
      %vm411 = vmpackc.low %vm257, %vm256
      %vm412 = vmpackc.low %vm259, %vm258
      %vm413 = vmpackc.low %vm261, %vm260
      %vm414 = vmpackc.low %vm263, %vm262
      %vm415 = vmpackc.low %vm265, %vm264
      %vm416 = vmpackc.low %vm267, %vm266
      %vm417 = vmpackc.low %vm269, %vm268
      %vm418 = vmpackc.low %vm271, %vm270
      %vm419 = vmpackc.low %vm273, %vm272
      %vm420 = vmpackc.low %vm275, %vm274
      %vm421 = vmpackc.low %vm277, %vm276
      %vm422 = vmpackc.low %vm279, %vm278
      %vm423 = vmpackc.low %vm281, %vm280
      %vm424 = vmpackc.low %vm283, %vm282
      %vm425 = vmpackc.low %vm285, %vm284
      %vm426 = vmpackc.low %vm287, %vm286
      %vm427 = vmpackc.low %vm289, %vm288
      %vm428 = vmpackc.low %vm291, %vm290
      %vm429 = vmpackc.low %vm293, %vm292
      %vm430 = vmpackc.low %vm295, %vm294
      %vm431 = vmpackc.low %vm297, %vm296
      %vm432 = vmpackc.low %vm299, %vm298
      %vm433 = vmpackc.low %vm301, %vm300
      %vm434 = vmpackc.low %vm303, %vm302
      %vm435 = vmpackc.low %vm305, %vm304
      %vm436 = vmpackc.low %vm307, %vm306
      %vm437 = vmpackc.low %vm309, %vm308
      %v438 = vsel %vm406, %v150, %v374
      %v439 = vsel %vm407, %v151, %v375
      %v440 = vsel %vm408, %v152, %v376
      %v441 = vsel %vm409, %v153, %v377
      %v442 = vsel %vm410, %v154, %v378
      %v443 = vsel %vm411, %v155, %v379
      %v444 = vsel %vm412, %v156, %v380
      %v445 = vsel %vm413, %v157, %v381
      %v446 = vsel %vm414, %v158, %v382
      %v447 = vsel %vm415, %v159, %v383
      %v448 = vsel %vm416, %v160, %v384
      %v449 = vsel %vm417, %v161, %v385
      %v450 = vsel %vm418, %v162, %v386
      %v451 = vsel %vm419, %v163, %v387
      %v452 = vsel %vm420, %v164, %v388
      %v453 = vsel %vm421, %v165, %v389
      %v454 = vsel %vm422, %v166, %v390
      %v455 = vsel %vm423, %v167, %v391
      %v456 = vsel %vm424, %v168, %v392
      %v457 = vsel %vm425, %v169, %v393
      %v458 = vsel %vm426, %v170, %v394
      %v459 = vsel %vm427, %v171, %v395
      %v460 = vsel %vm428, %v172, %v396
      %v461 = vsel %vm429, %v173, %v397
      %v462 = vsel %vm430, %v174, %v398
      %v463 = vsel %vm431, %v175, %v399
      %v464 = vsel %vm432, %v176, %v400
      %v465 = vsel %vm433, %v177, %v401
      %v466 = vsel %vm434, %v178, %v402
      %v467 = vsel %vm435, %v179, %v403
      %v468 = vsel %vm436, %v180, %v404
      %v469 = vsel %vm437, %v181, %v405
      %v470 = vld [vmem:[%s1] sm:$0xf]
      %v471 = vld [vmem:[%s1 + $0x4] sm:$0xf]
      %v472 = vld [vmem:[%s1 + $0x8] sm:$0xf]
      %v473 = vld [vmem:[%s1 + $0xc] sm:$0xf]
      %v474 = vld [vmem:[%s1 + $0x10] sm:$0xf]
      %v475 = vld [vmem:[%s1 + $0x14] sm:$0xf]
      %v476 = vld [vmem:[%s1 + $0x18] sm:$0xf]
      %v477 = vld [vmem:[%s1 + $0x1c] sm:$0xf]
      %v478 = vld [vmem:[%s1 + $0x20] sm:$0xf]
      %v479 = vld [vmem:[%s1 + $0x24] sm:$0xf]
      %v480 = vld [vmem:[%s1 + $0x28] sm:$0xf]
      %v481 = vld [vmem:[%s1 + $0x2c] sm:$0xf]
      %v482 = vld [vmem:[%s1 + $0x30] sm:$0xf]
      %v483 = vld [vmem:[%s1 + $0x34] sm:$0xf]
      %v484 = vld [vmem:[%s1 + $0x38] sm:$0xf]
      %v485 = vld [vmem:[%s1 + $0x3c] sm:$0xf]
      %v486 = vld [vmem:[%s1 + $0x40] sm:$0xf]
      %v487 = vld [vmem:[%s1 + $0x44] sm:$0xf]
      %v488 = vld [vmem:[%s1 + $0x48] sm:$0xf]
      %v489 = vld [vmem:[%s1 + $0x4c] sm:$0xf]
      %v490 = vld [vmem:[%s1 + $0x50] sm:$0xf]
      %v491 = vld [vmem:[%s1 + $0x54] sm:$0xf]
      %v492 = vld [vmem:[%s1 + $0x58] sm:$0xf]
      %v493 = vld [vmem:[%s1 + $0x5c] sm:$0xf]
      %v494 = vld [vmem:[%s1 + $0x60] sm:$0xf]
      %v495 = vld [vmem:[%s1 + $0x64] sm:$0xf]
      %v496 = vld [vmem:[%s1 + $0x68] sm:$0xf]
      %v497 = vld [vmem:[%s1 + $0x6c] sm:$0xf]
      %v498 = vld [vmem:[%s1 + $0x70] sm:$0xf]
      %v499 = vld [vmem:[%s1 + $0x74] sm:$0xf]
      %v500 = vld [vmem:[%s1 + $0x78] sm:$0xf]
      %v501 = vld [vmem:[%s1 + $0x7c] sm:$0xf]
      %v534 = vunpack.c.l.b16 %v438
      %v535 = vunpack.c.h.b16 %v438
      %v536 = vunpack.c.l.b16 %v439
      %v537 = vunpack.c.h.b16 %v439
      %v538 = vunpack.c.l.b16 %v440
      %v539 = vunpack.c.h.b16 %v440
      %v540 = vunpack.c.l.b16 %v441
      %v541 = vunpack.c.h.b16 %v441
      %v542 = vunpack.c.l.b16 %v442
      %v543 = vunpack.c.h.b16 %v442
      %v544 = vunpack.c.l.b16 %v443
      %v545 = vunpack.c.h.b16 %v443
      %v546 = vunpack.c.l.b16 %v444
      %v547 = vunpack.c.h.b16 %v444
      %v548 = vunpack.c.l.b16 %v445
      %v549 = vunpack.c.h.b16 %v445
      %v550 = vunpack.c.l.b16 %v446
      %v551 = vunpack.c.h.b16 %v446
      %v552 = vunpack.c.l.b16 %v447
      %v553 = vunpack.c.h.b16 %v447
      %v554 = vunpack.c.l.b16 %v448
      %v555 = vunpack.c.h.b16 %v448
      %v556 = vunpack.c.l.b16 %v449
      %v557 = vunpack.c.h.b16 %v449
      %v558 = vunpack.c.l.b16 %v450
      %v559 = vunpack.c.h.b16 %v450
      %v560 = vunpack.c.l.b16 %v451
      %v561 = vunpack.c.h.b16 %v451
      %v562 = vunpack.c.l.b16 %v452
      %v563 = vunpack.c.h.b16 %v452
      %v564 = vunpack.c.l.b16 %v453
      %v565 = vunpack.c.h.b16 %v453
      %v566 = vunpack.c.l.b16 %v454
      %v567 = vunpack.c.h.b16 %v454
      %v568 = vunpack.c.l.b16 %v455
      %v569 = vunpack.c.h.b16 %v455
      %v570 = vunpack.c.l.b16 %v456
      %v571 = vunpack.c.h.b16 %v456
      %v572 = vunpack.c.l.b16 %v457
      %v573 = vunpack.c.h.b16 %v457
      %v574 = vunpack.c.l.b16 %v458
      %v575 = vunpack.c.h.b16 %v458
      %v576 = vunpack.c.l.b16 %v459
      %v577 = vunpack.c.h.b16 %v459
      %v578 = vunpack.c.l.b16 %v460
      %v579 = vunpack.c.h.b16 %v460
      %v580 = vunpack.c.l.b16 %v461
      %v581 = vunpack.c.h.b16 %v461
      %v582 = vunpack.c.l.b16 %v462
      %v583 = vunpack.c.h.b16 %v462
      %v584 = vunpack.c.l.b16 %v463
      %v585 = vunpack.c.h.b16 %v463
      %v586 = vunpack.c.l.b16 %v464
      %v587 = vunpack.c.h.b16 %v464
      %v588 = vunpack.c.l.b16 %v465
      %v589 = vunpack.c.h.b16 %v465
      %v590 = vunpack.c.l.b16 %v466
      %v591 = vunpack.c.h.b16 %v466
      %v592 = vunpack.c.l.b16 %v467
      %v593 = vunpack.c.h.b16 %v467
      %v594 = vunpack.c.l.b16 %v468
      %v595 = vunpack.c.h.b16 %v468
      %v596 = vunpack.c.l.b16 %v469
      %v597 = vunpack.c.h.b16 %v469
      %v598 = vpack.c.b16 %v536, %v534
      %v599 = vpack.c.b16 %v537, %v535
      %v600 = vpack.c.b16 %v540, %v538
      %v601 = vpack.c.b16 %v541, %v539
      %v602 = vpack.c.b16 %v544, %v542
      %v603 = vpack.c.b16 %v545, %v543
      %v604 = vpack.c.b16 %v548, %v546
      %v605 = vpack.c.b16 %v549, %v547
      %v606 = vpack.c.b16 %v552, %v550
      %v607 = vpack.c.b16 %v553, %v551
      %v608 = vpack.c.b16 %v556, %v554
      %v609 = vpack.c.b16 %v557, %v555
      %v610 = vpack.c.b16 %v560, %v558
      %v611 = vpack.c.b16 %v561, %v559
      %v612 = vpack.c.b16 %v564, %v562
      %v613 = vpack.c.b16 %v565, %v563
      %v614 = vpack.c.b16 %v568, %v566
      %v615 = vpack.c.b16 %v569, %v567
      %v616 = vpack.c.b16 %v572, %v570
      %v617 = vpack.c.b16 %v573, %v571
      %v618 = vpack.c.b16 %v576, %v574
      %v619 = vpack.c.b16 %v577, %v575
      %v620 = vpack.c.b16 %v580, %v578
      %v621 = vpack.c.b16 %v581, %v579
      %v622 = vpack.c.b16 %v584, %v582
      %v623 = vpack.c.b16 %v585, %v583
      %v624 = vpack.c.b16 %v588, %v586
      %v625 = vpack.c.b16 %v589, %v587
      %v626 = vpack.c.b16 %v592, %v590
      %v627 = vpack.c.b16 %v593, %v591
      %v628 = vpack.c.b16 %v596, %v594
      %v629 = vpack.c.b16 %v597, %v595
      %v694 = vunpack.c.l.b16 %v470
      %v695 = vunpack.c.l.b16 %v471
      %v696 = vunpack.c.l.b16 %v472
      %v697 = vunpack.c.l.b16 %v473
      %v698 = vunpack.c.l.b16 %v474
      %v699 = vunpack.c.l.b16 %v475
      %v700 = vunpack.c.l.b16 %v476
      %v701 = vunpack.c.l.b16 %v477
      %v702 = vunpack.c.l.b16 %v478
      %v703 = vunpack.c.l.b16 %v479
      %v704 = vunpack.c.l.b16 %v480
      %v705 = vunpack.c.l.b16 %v481
      %v706 = vunpack.c.l.b16 %v482
      %v707 = vunpack.c.l.b16 %v483
      %v708 = vunpack.c.l.b16 %v484
      %v709 = vunpack.c.l.b16 %v485
      %v710 = vunpack.c.l.b16 %v486
      %v711 = vunpack.c.l.b16 %v487
      %v712 = vunpack.c.l.b16 %v488
      %v713 = vunpack.c.l.b16 %v489
      %v714 = vunpack.c.l.b16 %v490
      %v715 = vunpack.c.l.b16 %v491
      %v716 = vunpack.c.l.b16 %v492
      %v717 = vunpack.c.l.b16 %v493
      %v718 = vunpack.c.l.b16 %v494
      %v719 = vunpack.c.l.b16 %v495
      %v720 = vunpack.c.l.b16 %v496
      %v721 = vunpack.c.l.b16 %v497
      %v722 = vunpack.c.l.b16 %v498
      %v723 = vunpack.c.l.b16 %v499
      %v724 = vunpack.c.l.b16 %v500
      %v725 = vunpack.c.l.b16 %v501
      %v726 = vpack.c.b16 %v695, %v694
      %v727 = vpack.c.b16 %v697, %v696
      %v728 = vpack.c.b16 %v699, %v698
      %v729 = vpack.c.b16 %v701, %v700
      %v730 = vpack.c.b16 %v703, %v702
      %v731 = vpack.c.b16 %v705, %v704
      %v732 = vpack.c.b16 %v707, %v706
      %v733 = vpack.c.b16 %v709, %v708
      %v734 = vpack.c.b16 %v711, %v710
      %v735 = vpack.c.b16 %v713, %v712
      %v736 = vpack.c.b16 %v715, %v714
      %v737 = vpack.c.b16 %v717, %v716
      %v738 = vpack.c.b16 %v719, %v718
      %v739 = vpack.c.b16 %v721, %v720
      %v740 = vpack.c.b16 %v723, %v722
      %v741 = vpack.c.b16 %v725, %v724
      %758 = vmatpush.bf16.msra.mxu0 %v733
      %759 = vmatpush.bf16.msra.mxu0 %v732
      %760 = vmatpush.bf16.msra.mxu0 %v731
      %761 = vmatpush.bf16.msra.mxu0 %v730
      %762 = vmatpush.bf16.msra.mxu0 %v729
      %763 = vmatpush.bf16.msra.mxu0 %v728
      %764 = vmatpush.bf16.msra.mxu0 %v727
      %765 = vmatpush.bf16.msra.mxu0 %v726
      %766 = vmatmul.bf16.gmra.mxu0 %v598
      %v767 = vpop.f32.mrf.mxu0
      %v768 = vadd.f32 0.0, %v767
      %v769 = vpop.f32.mrf.mxu0
      %v770 = vadd.f32 0.0, %v769
      %771 = vmatmul.bf16.gmra.mxu0 %v600
      %v772 = vpop.f32.mrf.mxu0
      %v773 = vadd.f32 0.0, %v772
      %v774 = vpop.f32.mrf.mxu0
      %v775 = vadd.f32 0.0, %v774
      %776 = vmatmul.bf16.gmra.mxu0 %v602
      %v777 = vpop.f32.mrf.mxu0
      %v778 = vadd.f32 0.0, %v777
      %v779 = vpop.f32.mrf.mxu0
      %v780 = vadd.f32 0.0, %v779
      %781 = vmatmul.bf16.gmra.mxu0 %v604
      %v782 = vpop.f32.mrf.mxu0
      %v783 = vadd.f32 0.0, %v782
      %v784 = vpop.f32.mrf.mxu0
      %v785 = vadd.f32 0.0, %v784
      %786 = vmatmul.bf16.gmra.mxu0 %v606
      %v787 = vpop.f32.mrf.mxu0
      %v788 = vadd.f32 0.0, %v787
      %v789 = vpop.f32.mrf.mxu0
      %v790 = vadd.f32 0.0, %v789
      %791 = vmatmul.bf16.gmra.mxu0 %v608
      %v792 = vpop.f32.mrf.mxu0
      %v793 = vadd.f32 0.0, %v792
      %v794 = vpop.f32.mrf.mxu0
      %v795 = vadd.f32 0.0, %v794
      %796 = vmatmul.bf16.gmra.mxu0 %v610
      %v797 = vpop.f32.mrf.mxu0
      %v798 = vadd.f32 0.0, %v797
      %v799 = vpop.f32.mrf.mxu0
      %v800 = vadd.f32 0.0, %v799
      %801 = vmatmul.bf16.gmra.mxu0 %v612
      %v802 = vpop.f32.mrf.mxu0
      %v803 = vadd.f32 0.0, %v802
      %v804 = vpop.f32.mrf.mxu0
      %v805 = vadd.f32 0.0, %v804
      %806 = vmatmul.bf16.gmra.mxu0 %v614
      %v807 = vpop.f32.mrf.mxu0
      %v808 = vadd.f32 0.0, %v807
      %v809 = vpop.f32.mrf.mxu0
      %v810 = vadd.f32 0.0, %v809
      %811 = vmatmul.bf16.gmra.mxu0 %v616
      %v812 = vpop.f32.mrf.mxu0
      %v813 = vadd.f32 0.0, %v812
      %v814 = vpop.f32.mrf.mxu0
      %v815 = vadd.f32 0.0, %v814
      %816 = vmatmul.bf16.gmra.mxu0 %v618
      %v817 = vpop.f32.mrf.mxu0
      %v818 = vadd.f32 0.0, %v817
      %v819 = vpop.f32.mrf.mxu0
      %v820 = vadd.f32 0.0, %v819
      %821 = vmatmul.bf16.gmra.mxu0 %v620
      %v822 = vpop.f32.mrf.mxu0
      %v823 = vadd.f32 0.0, %v822
      %v824 = vpop.f32.mrf.mxu0
      %v825 = vadd.f32 0.0, %v824
      %826 = vmatmul.bf16.gmra.mxu0 %v622
      %v827 = vpop.f32.mrf.mxu0
      %v828 = vadd.f32 0.0, %v827
      %v829 = vpop.f32.mrf.mxu0
      %v830 = vadd.f32 0.0, %v829
      %831 = vmatmul.bf16.gmra.mxu0 %v624
      %v832 = vpop.f32.mrf.mxu0
      %v833 = vadd.f32 0.0, %v832
      %v834 = vpop.f32.mrf.mxu0
      %v835 = vadd.f32 0.0, %v834
      %836 = vmatmul.bf16.gmra.mxu0 %v626
      %v837 = vpop.f32.mrf.mxu0
      %v838 = vadd.f32 0.0, %v837
      %v839 = vpop.f32.mrf.mxu0
      %v840 = vadd.f32 0.0, %v839
      %841 = vmatmul.bf16.gmra.mxu0 %v628
      %v842 = vpop.f32.mrf.mxu0
      %v843 = vadd.f32 0.0, %v842
      %v844 = vpop.f32.mrf.mxu0
      %v845 = vadd.f32 0.0, %v844
      %846 = vdwg.mxu0
      %847 = vmatpush.bf16.msra.mxu0 %v741
      %848 = vmatpush.bf16.msra.mxu0 %v740
      %849 = vmatpush.bf16.msra.mxu0 %v739
      %850 = vmatpush.bf16.msra.mxu0 %v738
      %851 = vmatpush.bf16.msra.mxu0 %v737
      %852 = vmatpush.bf16.msra.mxu0 %v736
      %853 = vmatpush.bf16.msra.mxu0 %v735
      %854 = vmatpush.bf16.msra.mxu0 %v734
      %855 = vmatmul.bf16.gmra.mxu0 %v599
      %v856 = vpop.f32.mrf.mxu0
      %v857 = vadd.f32 %v768, %v856
      %v858 = vpop.f32.mrf.mxu0
      %v859 = vadd.f32 %v770, %v858
      %860 = vmatmul.bf16.gmra.mxu0 %v601
      %v861 = vpop.f32.mrf.mxu0
      %v862 = vadd.f32 %v773, %v861
      %v863 = vpop.f32.mrf.mxu0
      %v864 = vadd.f32 %v775, %v863
      %865 = vmatmul.bf16.gmra.mxu0 %v603
      %v866 = vpop.f32.mrf.mxu0
      %v867 = vadd.f32 %v778, %v866
      %v868 = vpop.f32.mrf.mxu0
      %v869 = vadd.f32 %v780, %v868
      %870 = vmatmul.bf16.gmra.mxu0 %v605
      %v871 = vpop.f32.mrf.mxu0
      %v872 = vadd.f32 %v783, %v871
      %v873 = vpop.f32.mrf.mxu0
      %v874 = vadd.f32 %v785, %v873
      %875 = vmatmul.bf16.gmra.mxu0 %v607
      %v876 = vpop.f32.mrf.mxu0
      %v877 = vadd.f32 %v788, %v876
      %v878 = vpop.f32.mrf.mxu0
      %v879 = vadd.f32 %v790, %v878
      %880 = vmatmul.bf16.gmra.mxu0 %v609
      %v881 = vpop.f32.mrf.mxu0
      %v882 = vadd.f32 %v793, %v881
      %v883 = vpop.f32.mrf.mxu0
      %v884 = vadd.f32 %v795, %v883
      %885 = vmatmul.bf16.gmra.mxu0 %v611
      %v886 = vpop.f32.mrf.mxu0
      %v887 = vadd.f32 %v798, %v886
      %v888 = vpop.f32.mrf.mxu0
      %v889 = vadd.f32 %v800, %v888
      %890 = vmatmul.bf16.gmra.mxu0 %v613
      %v891 = vpop.f32.mrf.mxu0
      %v892 = vadd.f32 %v803, %v891
      %v893 = vpop.f32.mrf.mxu0
      %v894 = vadd.f32 %v805, %v893
      %895 = vmatmul.bf16.gmra.mxu0 %v615
      %v896 = vpop.f32.mrf.mxu0
      %v897 = vadd.f32 %v808, %v896
      %v898 = vpop.f32.mrf.mxu0
      %v899 = vadd.f32 %v810, %v898
      %900 = vmatmul.bf16.gmra.mxu0 %v617
      %v901 = vpop.f32.mrf.mxu0
      %v902 = vadd.f32 %v813, %v901
      %v903 = vpop.f32.mrf.mxu0
      %v904 = vadd.f32 %v815, %v903
      %905 = vmatmul.bf16.gmra.mxu0 %v619
      %v906 = vpop.f32.mrf.mxu0
      %v907 = vadd.f32 %v818, %v906
      %v908 = vpop.f32.mrf.mxu0
      %v909 = vadd.f32 %v820, %v908
      %910 = vmatmul.bf16.gmra.mxu0 %v621
      %v911 = vpop.f32.mrf.mxu0
      %v912 = vadd.f32 %v823, %v911
      %v913 = vpop.f32.mrf.mxu0
      %v914 = vadd.f32 %v825, %v913
      %915 = vmatmul.bf16.gmra.mxu0 %v623
      %v916 = vpop.f32.mrf.mxu0
      %v917 = vadd.f32 %v828, %v916
      %v918 = vpop.f32.mrf.mxu0
      %v919 = vadd.f32 %v830, %v918
      %920 = vmatmul.bf16.gmra.mxu0 %v625
      %v921 = vpop.f32.mrf.mxu0
      %v922 = vadd.f32 %v833, %v921
      %v923 = vpop.f32.mrf.mxu0
      %v924 = vadd.f32 %v835, %v923
      %925 = vmatmul.bf16.gmra.mxu0 %v627
      %v926 = vpop.f32.mrf.mxu0
      %v927 = vadd.f32 %v838, %v926
      %v928 = vpop.f32.mrf.mxu0
      %v929 = vadd.f32 %v840, %v928
      %930 = vmatmul.bf16.gmra.mxu0 %v629
      %v931 = vpop.f32.mrf.mxu0
      %v932 = vadd.f32 %v843, %v931
      %v933 = vpop.f32.mrf.mxu0
      %v934 = vadd.f32 %v845, %v933
      %935 = vdwg.mxu0
      %v936 = vpack.c.bf16 %v857, %v857
      %v937 = vpack.c.bf16 %v859, %v859
      %v938 = vpack.c.bf16 %v862, %v862
      %v939 = vpack.c.bf16 %v864, %v864
      %v940 = vpack.c.bf16 %v867, %v867
      %v941 = vpack.c.bf16 %v869, %v869
      %v942 = vpack.c.bf16 %v872, %v872
      %v943 = vpack.c.bf16 %v874, %v874
      %v944 = vpack.c.bf16 %v877, %v877
      %v945 = vpack.c.bf16 %v879, %v879
      %v946 = vpack.c.bf16 %v882, %v882
      %v947 = vpack.c.bf16 %v884, %v884
      %v948 = vpack.c.bf16 %v887, %v887
      %v949 = vpack.c.bf16 %v889, %v889
      %v950 = vpack.c.bf16 %v892, %v892
      %v951 = vpack.c.bf16 %v894, %v894
      %v952 = vpack.c.bf16 %v897, %v897
      %v953 = vpack.c.bf16 %v899, %v899
      %v954 = vpack.c.bf16 %v902, %v902
      %v955 = vpack.c.bf16 %v904, %v904
      %v956 = vpack.c.bf16 %v907, %v907
      %v957 = vpack.c.bf16 %v909, %v909
      %v958 = vpack.c.bf16 %v912, %v912
      %v959 = vpack.c.bf16 %v914, %v914
      %v960 = vpack.c.bf16 %v917, %v917
      %v961 = vpack.c.bf16 %v919, %v919
      %v962 = vpack.c.bf16 %v922, %v922
      %v963 = vpack.c.bf16 %v924, %v924
      %v964 = vpack.c.bf16 %v927, %v927
      %v965 = vpack.c.bf16 %v929, %v929
      %v966 = vpack.c.bf16 %v932, %v932
      %v967 = vpack.c.bf16 %v934, %v934
      %968 = vst [vmem:[%s148] sm:$0xf] %v936
      %969 = vst [vmem:[%s148 + $0x4] sm:$0xf] %v937
      %970 = vst [vmem:[%s148 + $0x8] sm:$0xf] %v938
      %971 = vst [vmem:[%s148 + $0xc] sm:$0xf] %v939
      %972 = vst [vmem:[%s148 + $0x10] sm:$0xf] %v940
      %973 = vst [vmem:[%s148 + $0x14] sm:$0xf] %v941
      %974 = vst [vmem:[%s148 + $0x18] sm:$0xf] %v942
      %975 = vst [vmem:[%s148 + $0x1c] sm:$0xf] %v943
      %976 = vst [vmem:[%s148 + $0x20] sm:$0xf] %v944
      %977 = vst [vmem:[%s148 + $0x24] sm:$0xf] %v945
      %978 = vst [vmem:[%s148 + $0x28] sm:$0xf] %v946
      %979 = vst [vmem:[%s148 + $0x2c] sm:$0xf] %v947
      %980 = vst [vmem:[%s148 + $0x30] sm:$0xf] %v948
      %981 = vst [vmem:[%s148 + $0x34] sm:$0xf] %v949
      %982 = vst [vmem:[%s148 + $0x38] sm:$0xf] %v950
      %983 = vst [vmem:[%s148 + $0x3c] sm:$0xf] %v951
      %984 = vst [vmem:[%s148 + $0x40] sm:$0xf] %v952
      %985 = vst [vmem:[%s148 + $0x44] sm:$0xf] %v953
      %986 = vst [vmem:[%s148 + $0x48] sm:$0xf] %v954
      %987 = vst [vmem:[%s148 + $0x4c] sm:$0xf] %v955
      %988 = vst [vmem:[%s148 + $0x50] sm:$0xf] %v956
      %989 = vst [vmem:[%s148 + $0x54] sm:$0xf] %v957
      %990 = vst [vmem:[%s148 + $0x58] sm:$0xf] %v958
      %991 = vst [vmem:[%s148 + $0x5c] sm:$0xf] %v959
      %992 = vst [vmem:[%s148 + $0x60] sm:$0xf] %v960
      %993 = vst [vmem:[%s148 + $0x64] sm:$0xf] %v961
      %994 = vst [vmem:[%s148 + $0x68] sm:$0xf] %v962
      %995 = vst [vmem:[%s148 + $0x6c] sm:$0xf] %v963
      %996 = vst [vmem:[%s148 + $0x70] sm:$0xf] %v964
      %997 = vst [vmem:[%s148 + $0x74] sm:$0xf] %v965
      %998 = vst [vmem:[%s148 + $0x78] sm:$0xf] %v966
      %999 = vst [vmem:[%s148 + $0x7c] sm:$0xf] %v967
      %s1000 = smul.u32 32, %s13
      %p1001 = scmp.lt.s32.totalorder %s1000, 63
      %s1002 = scalar_select %p1001, %s1000, 63
      %s1003 = smul.addr %s1002, 4
      %s1004 = scalar_lea.vmem %s2, %s1003
      // Predicated region
      $region29: #{discriminator_forward.4} parent=27 // pred_check
        %p1005 = pneg %p78
      $region30: #{discriminator_forward.4} parent=27 // pred_check_branch
        %1007 = sbr.rel (%p1005) target = $region32
      $region31: #{discriminator_forward.4} parent=27 // pred_region
        %s1008 = smul.u32 32, %s13
      $region32: #{discriminator_forward.4} parent=27 // pred_fallthru
        _
    $region28: #{discriminator_forward.4} parent=5 // pred_fallthru
      _
    %p1009 = scmp.le.s32.totalorder 2, %s8
    // Predicated region
    $region33: #{discriminator_forward.4} parent=5 // pred_check
      %p1010 = pneg %p1009
    $region34: #{discriminator_forward.4} parent=5 // pred_check_branch
      %1012 = sbr.rel (%p1010) target = $region36
    $region35: #{discriminator_forward.4} parent=5 // pred_region
      %s1013 = ssub.s32 %s8, 2
      // Predicated region
      $region37: #{discriminator_forward.4} parent=35 // pred_check
        %p1014 = pneg %p84
      $region38: #{discriminator_forward.4} parent=35 // pred_check_branch
        %1016 = sbr.rel (%p1014) target = $region40
      $region39: #{discriminator_forward.4} parent=35 // pred_region
        %s1017 = smul.u32 32, %s14
        %p1018 = scmp.lt.s32.totalorder %s1017, 63
        %s1019 = scalar_select %p1018, %s1017, 63
        %s1020 = smul.addr %s1019, 4
        %s1021 = scalar_lea.vmem %s2, %s1020
      $region40: #{discriminator_forward.4} parent=35 // pred_fallthru
        _
    $region36: #{discriminator_forward.4} parent=5 // pred_fallthru
      _
  $region6: #{discriminator_forward.4} parent=0 // loop_footer
    %s12 = sadd.s32 1, %s8
  $region7: #{discriminator_forward.4} parent=0 // loop_footer_branch
    %7 = sbr.rel target = $region3
  $region8: #{discriminator_forward.4} parent=0 // loop_exit
    _

// kernel: discriminator_forward.5
$region0: #{discriminator_forward.5}
  #allocation0 [shape = 'u32[]', space=smem, size = 0x4, offset = 0x4, fixed_abs, tag = 'smem constant byte address 0x4 - core index']
  #allocation1 [shape = 'u32[72,128]{1,0:T(1,128)}', space=vmem, size = 0x9000, scoped, tag = 'internal scratch']
  #allocation2 [shape = 'f32[1,1]{1,0:T(1,128)S(6)}', space=smem, size = 0x200, scoped, tag = 'scoped memory for discriminator_forward.5']
  %s0 = inlined_call_operand.vmem [shape: bf16[128,512], index: 0, kind: input, shape index: {}]
  %s1 = inlined_call_operand.vmem [shape: bf16[512,128], index: 1, kind: input, shape index: {}]
  %s2 = inlined_call_operand.vmem [shape: f32[64,128], index: 2, kind: input, shape index: {}]
  %s3 = inlined_call_operand.<no memory space> [shape: f32[1,1], index: 3, kind: input, shape index: {}]
  %s4 = inlined_call_operand.vmem [shape: f32[2,1], index: 4, kind: output, shape index: {}]
  %s5 = sld [smem:[#allocation0]]
  $region26: #{discriminator_forward.5} parent=0
    _
  %s7 = ssub.s32 1, %s5
  %s8 = scalar_select 0, %s7, %s5
  %9 = sst [smem:[#allocation2]] %s3
  // Predicated region
  $region2: #{discriminator_forward.5} parent=0 // pred_check
    _
  $region3: #{discriminator_forward.5} parent=0 // pred_check_branch
    %11 = sbr.rel (0) target = $region5
  $region4: #{discriminator_forward.5} parent=0 // pred_region
    _
  $region5: #{discriminator_forward.5} parent=0 // pred_fallthru
    _
  // Predicated region
  $region6: #{discriminator_forward.5} parent=0 // pred_check
    _
  $region7: #{discriminator_forward.5} parent=0 // pred_check_branch
    %13 = sbr.rel (0) target = $region9
  $region8: #{discriminator_forward.5} parent=0 // pred_region
    _
  $region9: #{discriminator_forward.5} parent=0 // pred_fallthru
    _
  // Predicated region
  $region10: #{discriminator_forward.5} parent=0 // pred_check
    _
  $region11: #{discriminator_forward.5} parent=0 // pred_check_branch
    %15 = sbr.rel (0) target = $region13
  $region12: #{discriminator_forward.5} parent=0 // pred_region
    _
  $region13: #{discriminator_forward.5} parent=0 // pred_fallthru
    _
  // Predicated region
  $region14: #{discriminator_forward.5} parent=0 // pred_check
    _
  $region15: #{discriminator_forward.5} parent=0 // pred_check_branch
    %17 = sbr.rel (0) target = $region17
  $region16: #{discriminator_forward.5} parent=0 // pred_region
    _
  $region17: #{discriminator_forward.5} parent=0 // pred_fallthru
    _
  %v18 = vld [vmem:[%s0] sm:$0xff]
  %v19 = vld [vmem:[%s0 + $0x8] sm:$0xff]
  %v20 = vld [vmem:[%s0 + $0x10] sm:$0xff]
  %v21 = vld [vmem:[%s0 + $0x18] sm:$0xff]
  %v22 = vld [vmem:[%s0 + $0x20] sm:$0xff]
  %v23 = vld [vmem:[%s0 + $0x28] sm:$0xff]
  %v24 = vld [vmem:[%s0 + $0x30] sm:$0xff]
  %v25 = vld [vmem:[%s0 + $0x38] sm:$0xff]
  %v26 = vld [vmem:[%s0 + $0x40] sm:$0xff]
  %v27 = vld [vmem:[%s0 + $0x48] sm:$0xff]
  %v28 = vld [vmem:[%s0 + $0x50] sm:$0xff]
  %v29 = vld [vmem:[%s0 + $0x58] sm:$0xff]
  %v30 = vld [vmem:[%s0 + $0x60] sm:$0xff]
  %v31 = vld [vmem:[%s0 + $0x68] sm:$0xff]
  %v32 = vld [vmem:[%s0 + $0x70] sm:$0xff]
  %v33 = vld [vmem:[%s0 + $0x78] sm:$0xff]
  %v34 = vld [vmem:[%s0 + $0x80] sm:$0xff]
  %v35 = vld [vmem:[%s0 + $0x88] sm:$0xff]
  %v36 = vld [vmem:[%s0 + $0x90] sm:$0xff]
  %v37 = vld [vmem:[%s0 + $0x98] sm:$0xff]
  %v38 = vld [vmem:[%s0 + $0xa0] sm:$0xff]
  %v39 = vld [vmem:[%s0 + $0xa8] sm:$0xff]
  %v40 = vld [vmem:[%s0 + $0xb0] sm:$0xff]
  %v41 = vld [vmem:[%s0 + $0xb8] sm:$0xff]
  %v42 = vld [vmem:[%s0 + $0xc0] sm:$0xff]
  %v43 = vld [vmem:[%s0 + $0xc8] sm:$0xff]
  %v44 = vld [vmem:[%s0 + $0xd0] sm:$0xff]
  %v45 = vld [vmem:[%s0 + $0xd8] sm:$0xff]
  %v46 = vld [vmem:[%s0 + $0xe0] sm:$0xff]
  %v47 = vld [vmem:[%s0 + $0xe8] sm:$0xff]
  %v48 = vld [vmem:[%s0 + $0xf0] sm:$0xff]
  %v49 = vld [vmem:[%s0 + $0xf8] sm:$0xff]
  %v50 = vunpack.c.l.bf16 %v18
  %v51 = vunpack.c.h.bf16 %v18
  %v52 = vunpack.c.l.bf16 %v19
  %v53 = vunpack.c.h.bf16 %v19
  %v54 = vunpack.c.l.bf16 %v20
  %v55 = vunpack.c.h.bf16 %v20
  %v56 = vunpack.c.l.bf16 %v21
  %v57 = vunpack.c.h.bf16 %v21
  %v58 = vunpack.c.l.bf16 %v22
  %v59 = vunpack.c.h.bf16 %v22
  %v60 = vunpack.c.l.bf16 %v23
  %v61 = vunpack.c.h.bf16 %v23
  %v62 = vunpack.c.l.bf16 %v24
  %v63 = vunpack.c.h.bf16 %v24
  %v64 = vunpack.c.l.bf16 %v25
  %v65 = vunpack.c.h.bf16 %v25
  %v66 = vunpack.c.l.bf16 %v26
  %v67 = vunpack.c.h.bf16 %v26
  %v68 = vunpack.c.l.bf16 %v27
  %v69 = vunpack.c.h.bf16 %v27
  %v70 = vunpack.c.l.bf16 %v28
  %v71 = vunpack.c.h.bf16 %v28
  %v72 = vunpack.c.l.bf16 %v29
  %v73 = vunpack.c.h.bf16 %v29
  %v74 = vunpack.c.l.bf16 %v30
  %v75 = vunpack.c.h.bf16 %v30
  %v76 = vunpack.c.l.bf16 %v31
  %v77 = vunpack.c.h.bf16 %v31
  %v78 = vunpack.c.l.bf16 %v32
  %v79 = vunpack.c.h.bf16 %v32
  %v80 = vunpack.c.l.bf16 %v33
  %v81 = vunpack.c.h.bf16 %v33
  %v82 = vunpack.c.l.bf16 %v34
  %v83 = vunpack.c.h.bf16 %v34
  %v84 = vunpack.c.l.bf16 %v35
  %v85 = vunpack.c.h.bf16 %v35
  %v86 = vunpack.c.l.bf16 %v36
  %v87 = vunpack.c.h.bf16 %v36
  %v88 = vunpack.c.l.bf16 %v37
  %v89 = vunpack.c.h.bf16 %v37
  %v90 = vunpack.c.l.bf16 %v38
  %v91 = vunpack.c.h.bf16 %v38
  %v92 = vunpack.c.l.bf16 %v39
  %v93 = vunpack.c.h.bf16 %v39
  %v94 = vunpack.c.l.bf16 %v40
  %v95 = vunpack.c.h.bf16 %v40
  %v96 = vunpack.c.l.bf16 %v41
  %v97 = vunpack.c.h.bf16 %v41
  %v98 = vunpack.c.l.bf16 %v42
  %v99 = vunpack.c.h.bf16 %v42
  %v100 = vunpack.c.l.bf16 %v43
  %v101 = vunpack.c.h.bf16 %v43
  %v102 = vunpack.c.l.bf16 %v44
  %v103 = vunpack.c.h.bf16 %v44
  %v104 = vunpack.c.l.bf16 %v45
  %v105 = vunpack.c.h.bf16 %v45
  %v106 = vunpack.c.l.bf16 %v46
  %v107 = vunpack.c.h.bf16 %v46
  %v108 = vunpack.c.l.bf16 %v47
  %v109 = vunpack.c.h.bf16 %v47
  %v110 = vunpack.c.l.bf16 %v48
  %v111 = vunpack.c.h.bf16 %v48
  %v112 = vunpack.c.l.bf16 %v49
  %v113 = vunpack.c.h.bf16 %v49
  %vm114 = vcmp.ge.f32.partialorder %v50, 0.0
  %vm115 = vcmp.ge.f32.partialorder %v51, 0.0
  %vm116 = vcmp.ge.f32.partialorder %v52, 0.0
  %vm117 = vcmp.ge.f32.partialorder %v53, 0.0
  %vm118 = vcmp.ge.f32.partialorder %v54, 0.0
  %vm119 = vcmp.ge.f32.partialorder %v55, 0.0
  %vm120 = vcmp.ge.f32.partialorder %v56, 0.0
  %vm121 = vcmp.ge.f32.partialorder %v57, 0.0
  %vm122 = vcmp.ge.f32.partialorder %v58, 0.0
  %vm123 = vcmp.ge.f32.partialorder %v59, 0.0
  %vm124 = vcmp.ge.f32.partialorder %v60, 0.0
  %vm125 = vcmp.ge.f32.partialorder %v61, 0.0
  %vm126 = vcmp.ge.f32.partialorder %v62, 0.0
  %vm127 = vcmp.ge.f32.partialorder %v63, 0.0
  %vm128 = vcmp.ge.f32.partialorder %v64, 0.0
  %vm129 = vcmp.ge.f32.partialorder %v65, 0.0
  %vm130 = vcmp.ge.f32.partialorder %v66, 0.0
  %vm131 = vcmp.ge.f32.partialorder %v67, 0.0
  %vm132 = vcmp.ge.f32.partialorder %v68, 0.0
  %vm133 = vcmp.ge.f32.partialorder %v69, 0.0
  %vm134 = vcmp.ge.f32.partialorder %v70, 0.0
  %vm135 = vcmp.ge.f32.partialorder %v71, 0.0
  %vm136 = vcmp.ge.f32.partialorder %v72, 0.0
  %vm137 = vcmp.ge.f32.partialorder %v73, 0.0
  %vm138 = vcmp.ge.f32.partialorder %v74, 0.0
  %vm139 = vcmp.ge.f32.partialorder %v75, 0.0
  %vm140 = vcmp.ge.f32.partialorder %v76, 0.0
  %vm141 = vcmp.ge.f32.partialorder %v77, 0.0
  %vm142 = vcmp.ge.f32.partialorder %v78, 0.0
  %vm143 = vcmp.ge.f32.partialorder %v79, 0.0
  %vm144 = vcmp.ge.f32.partialorder %v80, 0.0
  %vm145 = vcmp.ge.f32.partialorder %v81, 0.0
  %vm146 = vcmp.ge.f32.partialorder %v82, 0.0
  %vm147 = vcmp.ge.f32.partialorder %v83, 0.0
  %vm148 = vcmp.ge.f32.partialorder %v84, 0.0
  %vm149 = vcmp.ge.f32.partialorder %v85, 0.0
  %vm150 = vcmp.ge.f32.partialorder %v86, 0.0
  %vm151 = vcmp.ge.f32.partialorder %v87, 0.0
  %vm152 = vcmp.ge.f32.partialorder %v88, 0.0
  %vm153 = vcmp.ge.f32.partialorder %v89, 0.0
  %vm154 = vcmp.ge.f32.partialorder %v90, 0.0
  %vm155 = vcmp.ge.f32.partialorder %v91, 0.0
  %vm156 = vcmp.ge.f32.partialorder %v92, 0.0
  %vm157 = vcmp.ge.f32.partialorder %v93, 0.0
  %vm158 = vcmp.ge.f32.partialorder %v94, 0.0
  %vm159 = vcmp.ge.f32.partialorder %v95, 0.0
  %vm160 = vcmp.ge.f32.partialorder %v96, 0.0
  %vm161 = vcmp.ge.f32.partialorder %v97, 0.0
  %vm162 = vcmp.ge.f32.partialorder %v98, 0.0
  %vm163 = vcmp.ge.f32.partialorder %v99, 0.0
  %vm164 = vcmp.ge.f32.partialorder %v100, 0.0
  %vm165 = vcmp.ge.f32.partialorder %v101, 0.0
  %vm166 = vcmp.ge.f32.partialorder %v102, 0.0
  %vm167 = vcmp.ge.f32.partialorder %v103, 0.0
  %vm168 = vcmp.ge.f32.partialorder %v104, 0.0
  %vm169 = vcmp.ge.f32.partialorder %v105, 0.0
  %vm170 = vcmp.ge.f32.partialorder %v106, 0.0
  %vm171 = vcmp.ge.f32.partialorder %v107, 0.0
  %vm172 = vcmp.ge.f32.partialorder %v108, 0.0
  %vm173 = vcmp.ge.f32.partialorder %v109, 0.0
  %vm174 = vcmp.ge.f32.partialorder %v110, 0.0
  %vm175 = vcmp.ge.f32.partialorder %v111, 0.0
  %vm176 = vcmp.ge.f32.partialorder %v112, 0.0
  %vm177 = vcmp.ge.f32.partialorder %v113, 0.0
  %v178 = vmul.f32 %v50, 0.20019531
  %v179 = vmul.f32 %v51, 0.20019531
  %v180 = vmul.f32 %v52, 0.20019531
  %v181 = vmul.f32 %v53, 0.20019531
  %v182 = vmul.f32 %v54, 0.20019531
  %v183 = vmul.f32 %v55, 0.20019531
  %v184 = vmul.f32 %v56, 0.20019531
  %v185 = vmul.f32 %v57, 0.20019531
  %v186 = vmul.f32 %v58, 0.20019531
  %v187 = vmul.f32 %v59, 0.20019531
  %v188 = vmul.f32 %v60, 0.20019531
  %v189 = vmul.f32 %v61, 0.20019531
  %v190 = vmul.f32 %v62, 0.20019531
  %v191 = vmul.f32 %v63, 0.20019531
  %v192 = vmul.f32 %v64, 0.20019531
  %v193 = vmul.f32 %v65, 0.20019531
  %v194 = vmul.f32 %v66, 0.20019531
  %v195 = vmul.f32 %v67, 0.20019531
  %v196 = vmul.f32 %v68, 0.20019531
  %v197 = vmul.f32 %v69, 0.20019531
  %v198 = vmul.f32 %v70, 0.20019531
  %v199 = vmul.f32 %v71, 0.20019531
  %v200 = vmul.f32 %v72, 0.20019531
  %v201 = vmul.f32 %v73, 0.20019531
  %v202 = vmul.f32 %v74, 0.20019531
  %v203 = vmul.f32 %v75, 0.20019531
  %v204 = vmul.f32 %v76, 0.20019531
  %v205 = vmul.f32 %v77, 0.20019531
  %v206 = vmul.f32 %v78, 0.20019531
  %v207 = vmul.f32 %v79, 0.20019531
  %v208 = vmul.f32 %v80, 0.20019531
  %v209 = vmul.f32 %v81, 0.20019531
  %v210 = vmul.f32 %v82, 0.20019531
  %v211 = vmul.f32 %v83, 0.20019531
  %v212 = vmul.f32 %v84, 0.20019531
  %v213 = vmul.f32 %v85, 0.20019531
  %v214 = vmul.f32 %v86, 0.20019531
  %v215 = vmul.f32 %v87, 0.20019531
  %v216 = vmul.f32 %v88, 0.20019531
  %v217 = vmul.f32 %v89, 0.20019531
  %v218 = vmul.f32 %v90, 0.20019531
  %v219 = vmul.f32 %v91, 0.20019531
  %v220 = vmul.f32 %v92, 0.20019531
  %v221 = vmul.f32 %v93, 0.20019531
  %v222 = vmul.f32 %v94, 0.20019531
  %v223 = vmul.f32 %v95, 0.20019531
  %v224 = vmul.f32 %v96, 0.20019531
  %v225 = vmul.f32 %v97, 0.20019531
  %v226 = vmul.f32 %v98, 0.20019531
  %v227 = vmul.f32 %v99, 0.20019531
  %v228 = vmul.f32 %v100, 0.20019531
  %v229 = vmul.f32 %v101, 0.20019531
  %v230 = vmul.f32 %v102, 0.20019531
  %v231 = vmul.f32 %v103, 0.20019531
  %v232 = vmul.f32 %v104, 0.20019531
  %v233 = vmul.f32 %v105, 0.20019531
  %v234 = vmul.f32 %v106, 0.20019531
  %v235 = vmul.f32 %v107, 0.20019531
  %v236 = vmul.f32 %v108, 0.20019531
  %v237 = vmul.f32 %v109, 0.20019531
  %v238 = vmul.f32 %v110, 0.20019531
  %v239 = vmul.f32 %v111, 0.20019531
  %v240 = vmul.f32 %v112, 0.20019531
  %v241 = vmul.f32 %v113, 0.20019531
  %v242 = vpack.c.bf16 %v179, %v178
  %v243 = vpack.c.bf16 %v181, %v180
  %v244 = vpack.c.bf16 %v183, %v182
  %v245 = vpack.c.bf16 %v185, %v184
  %v246 = vpack.c.bf16 %v187, %v186
  %v247 = vpack.c.bf16 %v189, %v188
  %v248 = vpack.c.bf16 %v191, %v190
  %v249 = vpack.c.bf16 %v193, %v192
  %v250 = vpack.c.bf16 %v195, %v194
  %v251 = vpack.c.bf16 %v197, %v196
  %v252 = vpack.c.bf16 %v199, %v198
  %v253 = vpack.c.bf16 %v201, %v200
  %v254 = vpack.c.bf16 %v203, %v202
  %v255 = vpack.c.bf16 %v205, %v204
  %v256 = vpack.c.bf16 %v207, %v206
  %v257 = vpack.c.bf16 %v209, %v208
  %v258 = vpack.c.bf16 %v211, %v210
  %v259 = vpack.c.bf16 %v213, %v212
  %v260 = vpack.c.bf16 %v215, %v214
  %v261 = vpack.c.bf16 %v217, %v216
  %v262 = vpack.c.bf16 %v219, %v218
  %v263 = vpack.c.bf16 %v221, %v220
  %v264 = vpack.c.bf16 %v223, %v222
  %v265 = vpack.c.bf16 %v225, %v224
  %v266 = vpack.c.bf16 %v227, %v226
  %v267 = vpack.c.bf16 %v229, %v228
  %v268 = vpack.c.bf16 %v231, %v230
  %v269 = vpack.c.bf16 %v233, %v232
  %v270 = vpack.c.bf16 %v235, %v234
  %v271 = vpack.c.bf16 %v237, %v236
  %v272 = vpack.c.bf16 %v239, %v238
  %v273 = vpack.c.bf16 %v241, %v240
  %vm274 = vmpackc.low %vm115, %vm114
  %vm275 = vmpackc.low %vm117, %vm116
  %vm276 = vmpackc.low %vm119, %vm118
  %vm277 = vmpackc.low %vm121, %vm120
  %vm278 = vmpackc.low %vm123, %vm122
  %vm279 = vmpackc.low %vm125, %vm124
  %vm280 = vmpackc.low %vm127, %vm126
  %vm281 = vmpackc.low %vm129, %vm128
  %vm282 = vmpackc.low %vm131, %vm130
  %vm283 = vmpackc.low %vm133, %vm132
  %vm284 = vmpackc.low %vm135, %vm134
  %vm285 = vmpackc.low %vm137, %vm136
  %vm286 = vmpackc.low %vm139, %vm138
  %vm287 = vmpackc.low %vm141, %vm140
  %vm288 = vmpackc.low %vm143, %vm142
  %vm289 = vmpackc.low %vm145, %vm144
  %vm290 = vmpackc.low %vm147, %vm146
  %vm291 = vmpackc.low %vm149, %vm148
  %vm292 = vmpackc.low %vm151, %vm150
  %vm293 = vmpackc.low %vm153, %vm152
  %vm294 = vmpackc.low %vm155, %vm154
  %vm295 = vmpackc.low %vm157, %vm156
  %vm296 = vmpackc.low %vm159, %vm158
  %vm297 = vmpackc.low %vm161, %vm160
  %vm298 = vmpackc.low %vm163, %vm162
  %vm299 = vmpackc.low %vm165, %vm164
  %vm300 = vmpackc.low %vm167, %vm166
  %vm301 = vmpackc.low %vm169, %vm168
  %vm302 = vmpackc.low %vm171, %vm170
  %vm303 = vmpackc.low %vm173, %vm172
  %vm304 = vmpackc.low %vm175, %vm174
  %vm305 = vmpackc.low %vm177, %vm176
  %v306 = vsel %vm274, %v18, %v242
  %v307 = vsel %vm275, %v19, %v243
  %v308 = vsel %vm276, %v20, %v244
  %v309 = vsel %vm277, %v21, %v245
  %v310 = vsel %vm278, %v22, %v246
  %v311 = vsel %vm279, %v23, %v247
  %v312 = vsel %vm280, %v24, %v248
  %v313 = vsel %vm281, %v25, %v249
  %v314 = vsel %vm282, %v26, %v250
  %v315 = vsel %vm283, %v27, %v251
  %v316 = vsel %vm284, %v28, %v252
  %v317 = vsel %vm285, %v29, %v253
  %v318 = vsel %vm286, %v30, %v254
  %v319 = vsel %vm287, %v31, %v255
  %v320 = vsel %vm288, %v32, %v256
  %v321 = vsel %vm289, %v33, %v257
  %v322 = vsel %vm290, %v34, %v258
  %v323 = vsel %vm291, %v35, %v259
  %v324 = vsel %vm292, %v36, %v260
  %v325 = vsel %vm293, %v37, %v261
  %v326 = vsel %vm294, %v38, %v262
  %v327 = vsel %vm295, %v39, %v263
  %v328 = vsel %vm296, %v40, %v264
  %v329 = vsel %vm297, %v41, %v265
  %v330 = vsel %vm298, %v42, %v266
  %v331 = vsel %vm299, %v43, %v267
  %v332 = vsel %vm300, %v44, %v268
  %v333 = vsel %vm301, %v45, %v269
  %v334 = vsel %vm302, %v46, %v270
  %v335 = vsel %vm303, %v47, %v271
  %v336 = vsel %vm304, %v48, %v272
  %v337 = vsel %vm305, %v49, %v273
  %v338 = vld [vmem:[%s1] sm:$0xf]
  %v339 = vld [vmem:[%s1 + $0x4] sm:$0xf]
  %v340 = vld [vmem:[%s1 + $0x8] sm:$0xf]
  %v341 = vld [vmem:[%s1 + $0xc] sm:$0xf]
  %v342 = vld [vmem:[%s1 + $0x10] sm:$0xf]
  %v343 = vld [vmem:[%s1 + $0x14] sm:$0xf]
  %v344 = vld [vmem:[%s1 + $0x18] sm:$0xf]
  %v345 = vld [vmem:[%s1 + $0x1c] sm:$0xf]
  %v346 = vld [vmem:[%s1 + $0x20] sm:$0xf]
  %v347 = vld [vmem:[%s1 + $0x24] sm:$0xf]
  %v348 = vld [vmem:[%s1 + $0x28] sm:$0xf]
  %v349 = vld [vmem:[%s1 + $0x2c] sm:$0xf]
  %v350 = vld [vmem:[%s1 + $0x30] sm:$0xf]
  %v351 = vld [vmem:[%s1 + $0x34] sm:$0xf]
  %v352 = vld [vmem:[%s1 + $0x38] sm:$0xf]
  %v353 = vld [vmem:[%s1 + $0x3c] sm:$0xf]
  %v354 = vld [vmem:[%s1 + $0x40] sm:$0xf]
  %v355 = vld [vmem:[%s1 + $0x44] sm:$0xf]
  %v356 = vld [vmem:[%s1 + $0x48] sm:$0xf]
  %v357 = vld [vmem:[%s1 + $0x4c] sm:$0xf]
  %v358 = vld [vmem:[%s1 + $0x50] sm:$0xf]
  %v359 = vld [vmem:[%s1 + $0x54] sm:$0xf]
  %v360 = vld [vmem:[%s1 + $0x58] sm:$0xf]
  %v361 = vld [vmem:[%s1 + $0x5c] sm:$0xf]
  %v362 = vld [vmem:[%s1 + $0x60] sm:$0xf]
  %v363 = vld [vmem:[%s1 + $0x64] sm:$0xf]
  %v364 = vld [vmem:[%s1 + $0x68] sm:$0xf]
  %v365 = vld [vmem:[%s1 + $0x6c] sm:$0xf]
  %v366 = vld [vmem:[%s1 + $0x70] sm:$0xf]
  %v367 = vld [vmem:[%s1 + $0x74] sm:$0xf]
  %v368 = vld [vmem:[%s1 + $0x78] sm:$0xf]
  %v369 = vld [vmem:[%s1 + $0x7c] sm:$0xf]
  %v370 = vld [vmem:[%s1 + $0x80] sm:$0xf]
  %v371 = vld [vmem:[%s1 + $0x84] sm:$0xf]
  %v372 = vld [vmem:[%s1 + $0x88] sm:$0xf]
  %v373 = vld [vmem:[%s1 + $0x8c] sm:$0xf]
  %v374 = vld [vmem:[%s1 + $0x90] sm:$0xf]
  %v375 = vld [vmem:[%s1 + $0x94] sm:$0xf]
  %v376 = vld [vmem:[%s1 + $0x98] sm:$0xf]
  %v377 = vld [vmem:[%s1 + $0x9c] sm:$0xf]
  %v378 = vld [vmem:[%s1 + $0xa0] sm:$0xf]
  %v379 = vld [vmem:[%s1 + $0xa4] sm:$0xf]
  %v380 = vld [vmem:[%s1 + $0xa8] sm:$0xf]
  %v381 = vld [vmem:[%s1 + $0xac] sm:$0xf]
  %v382 = vld [vmem:[%s1 + $0xb0] sm:$0xf]
  %v383 = vld [vmem:[%s1 + $0xb4] sm:$0xf]
  %v384 = vld [vmem:[%s1 + $0xb8] sm:$0xf]
  %v385 = vld [vmem:[%s1 + $0xbc] sm:$0xf]
  %v386 = vld [vmem:[%s1 + $0xc0] sm:$0xf]
  %v387 = vld [vmem:[%s1 + $0xc4] sm:$0xf]
  %v388 = vld [vmem:[%s1 + $0xc8] sm:$0xf]
  %v389 = vld [vmem:[%s1 + $0xcc] sm:$0xf]
  %v390 = vld [vmem:[%s1 + $0xd0] sm:$0xf]
  %v391 = vld [vmem:[%s1 + $0xd4] sm:$0xf]
  %v392 = vld [vmem:[%s1 + $0xd8] sm:$0xf]
  %v393 = vld [vmem:[%s1 + $0xdc] sm:$0xf]
  %v394 = vld [vmem:[%s1 + $0xe0] sm:$0xf]
  %v395 = vld [vmem:[%s1 + $0xe4] sm:$0xf]
  %v396 = vld [vmem:[%s1 + $0xe8] sm:$0xf]
  %v397 = vld [vmem:[%s1 + $0xec] sm:$0xf]
  %v398 = vld [vmem:[%s1 + $0xf0] sm:$0xf]
  %v399 = vld [vmem:[%s1 + $0xf4] sm:$0xf]
  %v400 = vld [vmem:[%s1 + $0xf8] sm:$0xf]
  %v401 = vld [vmem:[%s1 + $0xfc] sm:$0xf]
  %v434 = vunpack.c.l.b16 %v306
  %v435 = vunpack.c.h.b16 %v306
  %v436 = vunpack.c.l.b16 %v307
  %v437 = vunpack.c.h.b16 %v307
  %v438 = vunpack.c.l.b16 %v308
  %v439 = vunpack.c.h.b16 %v308
  %v440 = vunpack.c.l.b16 %v309
  %v441 = vunpack.c.h.b16 %v309
  %v442 = vunpack.c.l.b16 %v310
  %v443 = vunpack.c.h.b16 %v310
  %v444 = vunpack.c.l.b16 %v311
  %v445 = vunpack.c.h.b16 %v311
  %v446 = vunpack.c.l.b16 %v312
  %v447 = vunpack.c.h.b16 %v312
  %v448 = vunpack.c.l.b16 %v313
  %v449 = vunpack.c.h.b16 %v313
  %v450 = vunpack.c.l.b16 %v314
  %v451 = vunpack.c.h.b16 %v314
  %v452 = vunpack.c.l.b16 %v315
  %v453 = vunpack.c.h.b16 %v315
  %v454 = vunpack.c.l.b16 %v316
  %v455 = vunpack.c.h.b16 %v316
  %v456 = vunpack.c.l.b16 %v317
  %v457 = vunpack.c.h.b16 %v317
  %v458 = vunpack.c.l.b16 %v318
  %v459 = vunpack.c.h.b16 %v318
  %v460 = vunpack.c.l.b16 %v319
  %v461 = vunpack.c.h.b16 %v319
  %v462 = vunpack.c.l.b16 %v320
  %v463 = vunpack.c.h.b16 %v320
  %v464 = vunpack.c.l.b16 %v321
  %v465 = vunpack.c.h.b16 %v321
  %v466 = vunpack.c.l.b16 %v322
  %v467 = vunpack.c.h.b16 %v322
  %v468 = vunpack.c.l.b16 %v323
  %v469 = vunpack.c.h.b16 %v323
  %v470 = vunpack.c.l.b16 %v324
  %v471 = vunpack.c.h.b16 %v324
  %v472 = vunpack.c.l.b16 %v325
  %v473 = vunpack.c.h.b16 %v325
  %v474 = vunpack.c.l.b16 %v326
  %v475 = vunpack.c.h.b16 %v326
  %v476 = vunpack.c.l.b16 %v327
  %v477 = vunpack.c.h.b16 %v327
  %v478 = vunpack.c.l.b16 %v328
  %v479 = vunpack.c.h.b16 %v328
  %v480 = vunpack.c.l.b16 %v329
  %v481 = vunpack.c.h.b16 %v329
  %v482 = vunpack.c.l.b16 %v330
  %v483 = vunpack.c.h.b16 %v330
  %v484 = vunpack.c.l.b16 %v331
  %v485 = vunpack.c.h.b16 %v331
  %v486 = vunpack.c.l.b16 %v332
  %v487 = vunpack.c.h.b16 %v332
  %v488 = vunpack.c.l.b16 %v333
  %v489 = vunpack.c.h.b16 %v333
  %v490 = vunpack.c.l.b16 %v334
  %v491 = vunpack.c.h.b16 %v334
  %v492 = vunpack.c.l.b16 %v335
  %v493 = vunpack.c.h.b16 %v335
  %v494 = vunpack.c.l.b16 %v336
  %v495 = vunpack.c.h.b16 %v336
  %v496 = vunpack.c.l.b16 %v337
  %v497 = vunpack.c.h.b16 %v337
  %v498 = vpack.c.b16 %v438, %v434
  %v499 = vpack.c.b16 %v439, %v435
  %v500 = vpack.c.b16 %v440, %v436
  %v501 = vpack.c.b16 %v441, %v437
  %v502 = vpack.c.b16 %v446, %v442
  %v503 = vpack.c.b16 %v447, %v443
  %v504 = vpack.c.b16 %v448, %v444
  %v505 = vpack.c.b16 %v449, %v445
  %v506 = vpack.c.b16 %v454, %v450
  %v507 = vpack.c.b16 %v455, %v451
  %v508 = vpack.c.b16 %v456, %v452
  %v509 = vpack.c.b16 %v457, %v453
  %v510 = vpack.c.b16 %v462, %v458
  %v511 = vpack.c.b16 %v463, %v459
  %v512 = vpack.c.b16 %v464, %v460
  %v513 = vpack.c.b16 %v465, %v461
  %v514 = vpack.c.b16 %v470, %v466
  %v515 = vpack.c.b16 %v471, %v467
  %v516 = vpack.c.b16 %v472, %v468
  %v517 = vpack.c.b16 %v473, %v469
  %v518 = vpack.c.b16 %v478, %v474
  %v519 = vpack.c.b16 %v479, %v475
  %v520 = vpack.c.b16 %v480, %v476
  %v521 = vpack.c.b16 %v481, %v477
  %v522 = vpack.c.b16 %v486, %v482
  %v523 = vpack.c.b16 %v487, %v483
  %v524 = vpack.c.b16 %v488, %v484
  %v525 = vpack.c.b16 %v489, %v485
  %v526 = vpack.c.b16 %v494, %v490
  %v527 = vpack.c.b16 %v495, %v491
  %v528 = vpack.c.b16 %v496, %v492
  %v529 = vpack.c.b16 %v497, %v493
  %v626 = vunpack.c.l.b16 %v338
  %v627 = vunpack.c.l.b16 %v339
  %v628 = vunpack.c.l.b16 %v340
  %v629 = vunpack.c.l.b16 %v341
  %v630 = vunpack.c.l.b16 %v342
  %v631 = vunpack.c.l.b16 %v343
  %v632 = vunpack.c.l.b16 %v344
  %v633 = vunpack.c.l.b16 %v345
  %v634 = vunpack.c.l.b16 %v346
  %v635 = vunpack.c.l.b16 %v347
  %v636 = vunpack.c.l.b16 %v348
  %v637 = vunpack.c.l.b16 %v349
  %v638 = vunpack.c.l.b16 %v350
  %v639 = vunpack.c.l.b16 %v351
  %v640 = vunpack.c.l.b16 %v352
  %v641 = vunpack.c.l.b16 %v353
  %v642 = vunpack.c.l.b16 %v354
  %v643 = vunpack.c.l.b16 %v355
  %v644 = vunpack.c.l.b16 %v356
  %v645 = vunpack.c.l.b16 %v357
  %v646 = vunpack.c.l.b16 %v358
  %v647 = vunpack.c.l.b16 %v359
  %v648 = vunpack.c.l.b16 %v360
  %v649 = vunpack.c.l.b16 %v361
  %v650 = vunpack.c.l.b16 %v362
  %v651 = vunpack.c.l.b16 %v363
  %v652 = vunpack.c.l.b16 %v364
  %v653 = vunpack.c.l.b16 %v365
  %v654 = vunpack.c.l.b16 %v366
  %v655 = vunpack.c.l.b16 %v367
  %v656 = vunpack.c.l.b16 %v368
  %v657 = vunpack.c.l.b16 %v369
  %v658 = vunpack.c.l.b16 %v370
  %v659 = vunpack.c.l.b16 %v371
  %v660 = vunpack.c.l.b16 %v372
  %v661 = vunpack.c.l.b16 %v373
  %v662 = vunpack.c.l.b16 %v374
  %v663 = vunpack.c.l.b16 %v375
  %v664 = vunpack.c.l.b16 %v376
  %v665 = vunpack.c.l.b16 %v377
  %v666 = vunpack.c.l.b16 %v378
  %v667 = vunpack.c.l.b16 %v379
  %v668 = vunpack.c.l.b16 %v380
  %v669 = vunpack.c.l.b16 %v381
  %v670 = vunpack.c.l.b16 %v382
  %v671 = vunpack.c.l.b16 %v383
  %v672 = vunpack.c.l.b16 %v384
  %v673 = vunpack.c.l.b16 %v385
  %v674 = vunpack.c.l.b16 %v386
  %v675 = vunpack.c.l.b16 %v387
  %v676 = vunpack.c.l.b16 %v388
  %v677 = vunpack.c.l.b16 %v389
  %v678 = vunpack.c.l.b16 %v390
  %v679 = vunpack.c.l.b16 %v391
  %v680 = vunpack.c.l.b16 %v392
  %v681 = vunpack.c.l.b16 %v393
  %v682 = vunpack.c.l.b16 %v394
  %v683 = vunpack.c.l.b16 %v395
  %v684 = vunpack.c.l.b16 %v396
  %v685 = vunpack.c.l.b16 %v397
  %v686 = vunpack.c.l.b16 %v398
  %v687 = vunpack.c.l.b16 %v399
  %v688 = vunpack.c.l.b16 %v400
  %v689 = vunpack.c.l.b16 %v401
  %v690 = vpack.c.b16 %v627, %v626
  %v691 = vpack.c.b16 %v629, %v628
  %v692 = vpack.c.b16 %v631, %v630
  %v693 = vpack.c.b16 %v633, %v632
  %v694 = vpack.c.b16 %v635, %v634
  %v695 = vpack.c.b16 %v637, %v636
  %v696 = vpack.c.b16 %v639, %v638
  %v697 = vpack.c.b16 %v641, %v640
  %v698 = vpack.c.b16 %v643, %v642
  %v699 = vpack.c.b16 %v645, %v644
  %v700 = vpack.c.b16 %v647, %v646
  %v701 = vpack.c.b16 %v649, %v648
  %v702 = vpack.c.b16 %v651, %v650
  %v703 = vpack.c.b16 %v653, %v652
  %v704 = vpack.c.b16 %v655, %v654
  %v705 = vpack.c.b16 %v657, %v656
  %v706 = vpack.c.b16 %v659, %v658
  %v707 = vpack.c.b16 %v661, %v660
  %v708 = vpack.c.b16 %v663, %v662
  %v709 = vpack.c.b16 %v665, %v664
  %v710 = vpack.c.b16 %v667, %v666
  %v711 = vpack.c.b16 %v669, %v668
  %v712 = vpack.c.b16 %v671, %v670
  %v713 = vpack.c.b16 %v673, %v672
  %v714 = vpack.c.b16 %v675, %v674
  %v715 = vpack.c.b16 %v677, %v676
  %v716 = vpack.c.b16 %v679, %v678
  %v717 = vpack.c.b16 %v681, %v680
  %v718 = vpack.c.b16 %v683, %v682
  %v719 = vpack.c.b16 %v685, %v684
  %v720 = vpack.c.b16 %v687, %v686
  %v721 = vpack.c.b16 %v689, %v688
  %754 = vmatpush.bf16.msra.mxu0 %v697
  %755 = vmatpush.bf16.msra.mxu0 %v696
  %756 = vmatpush.bf16.msra.mxu0 %v695
  %757 = vmatpush.bf16.msra.mxu0 %v694
  %758 = vmatpush.bf16.msra.mxu0 %v693
  %759 = vmatpush.bf16.msra.mxu0 %v692
  %760 = vmatpush.bf16.msra.mxu0 %v691
  %761 = vmatpush.bf16.msra.mxu0 %v690
  %762 = vmatmul.bf16.gmra.mxu0 %v498
  %v763 = vpop.f32.mrf.mxu0
  %v764 = vadd.f32 0.0, %v763
  %v765 = vpop.f32.mrf.mxu0
  %v766 = vadd.f32 0.0, %v765
  %767 = vmatmul.bf16.gmra.mxu0 %v502
  %v768 = vpop.f32.mrf.mxu0
  %v769 = vadd.f32 0.0, %v768
  %v770 = vpop.f32.mrf.mxu0
  %v771 = vadd.f32 0.0, %v770
  %772 = vmatmul.bf16.gmra.mxu0 %v506
  %v773 = vpop.f32.mrf.mxu0
  %v774 = vadd.f32 0.0, %v773
  %v775 = vpop.f32.mrf.mxu0
  %v776 = vadd.f32 0.0, %v775
  %777 = vmatmul.bf16.gmra.mxu0 %v510
  %v778 = vpop.f32.mrf.mxu0
  %v779 = vadd.f32 0.0, %v778
  %v780 = vpop.f32.mrf.mxu0
  %v781 = vadd.f32 0.0, %v780
  %782 = vmatmul.bf16.gmra.mxu0 %v514
  %v783 = vpop.f32.mrf.mxu0
  %v784 = vadd.f32 0.0, %v783
  %v785 = vpop.f32.mrf.mxu0
  %v786 = vadd.f32 0.0, %v785
  %787 = vmatmul.bf16.gmra.mxu0 %v518
  %v788 = vpop.f32.mrf.mxu0
  %v789 = vadd.f32 0.0, %v788
  %v790 = vpop.f32.mrf.mxu0
  %v791 = vadd.f32 0.0, %v790
  %792 = vmatmul.bf16.gmra.mxu0 %v522
  %v793 = vpop.f32.mrf.mxu0
  %v794 = vadd.f32 0.0, %v793
  %v795 = vpop.f32.mrf.mxu0
  %v796 = vadd.f32 0.0, %v795
  %797 = vmatmul.bf16.gmra.mxu0 %v526
  %v798 = vpop.f32.mrf.mxu0
  %v799 = vadd.f32 0.0, %v798
  %v800 = vpop.f32.mrf.mxu0
  %v801 = vadd.f32 0.0, %v800
  %802 = vdwg.mxu0
  %803 = vmatpush.bf16.msra.mxu0 %v705
  %804 = vmatpush.bf16.msra.mxu0 %v704
  %805 = vmatpush.bf16.msra.mxu0 %v703
  %806 = vmatpush.bf16.msra.mxu0 %v702
  %807 = vmatpush.bf16.msra.mxu0 %v701
  %808 = vmatpush.bf16.msra.mxu0 %v700
  %809 = vmatpush.bf16.msra.mxu0 %v699
  %810 = vmatpush.bf16.msra.mxu0 %v698
  %811 = vmatmul.bf16.gmra.mxu0 %v499
  %v812 = vpop.f32.mrf.mxu0
  %v813 = vadd.f32 %v764, %v812
  %v814 = vpop.f32.mrf.mxu0
  %v815 = vadd.f32 %v766, %v814
  %816 = vmatmul.bf16.gmra.mxu0 %v503
  %v817 = vpop.f32.mrf.mxu0
  %v818 = vadd.f32 %v769, %v817
  %v819 = vpop.f32.mrf.mxu0
  %v820 = vadd.f32 %v771, %v819
  %821 = vmatmul.bf16.gmra.mxu0 %v507
  %v822 = vpop.f32.mrf.mxu0
  %v823 = vadd.f32 %v774, %v822
  %v824 = vpop.f32.mrf.mxu0
  %v825 = vadd.f32 %v776, %v824
  %826 = vmatmul.bf16.gmra.mxu0 %v511
  %v827 = vpop.f32.mrf.mxu0
  %v828 = vadd.f32 %v779, %v827
  %v829 = vpop.f32.mrf.mxu0
  %v830 = vadd.f32 %v781, %v829
  %831 = vmatmul.bf16.gmra.mxu0 %v515
  %v832 = vpop.f32.mrf.mxu0
  %v833 = vadd.f32 %v784, %v832
  %v834 = vpop.f32.mrf.mxu0
  %v835 = vadd.f32 %v786, %v834
  %836 = vmatmul.bf16.gmra.mxu0 %v519
  %v837 = vpop.f32.mrf.mxu0
  %v838 = vadd.f32 %v789, %v837
  %v839 = vpop.f32.mrf.mxu0
  %v840 = vadd.f32 %v791, %v839
  %841 = vmatmul.bf16.gmra.mxu0 %v523
  %v842 = vpop.f32.mrf.mxu0
  %v843 = vadd.f32 %v794, %v842
  %v844 = vpop.f32.mrf.mxu0
  %v845 = vadd.f32 %v796, %v844
  %846 = vmatmul.bf16.gmra.mxu0 %v527
  %v847 = vpop.f32.mrf.mxu0
  %v848 = vadd.f32 %v799, %v847
  %v849 = vpop.f32.mrf.mxu0
  %v850 = vadd.f32 %v801, %v849
  %851 = vdwg.mxu0
  %852 = vmatpush.bf16.msra.mxu0 %v713
  %853 = vmatpush.bf16.msra.mxu0 %v712
  %854 = vmatpush.bf16.msra.mxu0 %v711
  %855 = vmatpush.bf16.msra.mxu0 %v710
  %856 = vmatpush.bf16.msra.mxu0 %v709
  %857 = vmatpush.bf16.msra.mxu0 %v708
  %858 = vmatpush.bf16.msra.mxu0 %v707
  %859 = vmatpush.bf16.msra.mxu0 %v706
  %860 = vmatmul.bf16.gmra.mxu0 %v500
  %v861 = vpop.f32.mrf.mxu0
  %v862 = vadd.f32 %v813, %v861
  %v863 = vpop.f32.mrf.mxu0
  %v864 = vadd.f32 %v815, %v863
  %865 = vmatmul.bf16.gmra.mxu0 %v504
  %v866 = vpop.f32.mrf.mxu0
  %v867 = vadd.f32 %v818, %v866
  %v868 = vpop.f32.mrf.mxu0
  %v869 = vadd.f32 %v820, %v868
  %870 = vmatmul.bf16.gmra.mxu0 %v508
  %v871 = vpop.f32.mrf.mxu0
  %v872 = vadd.f32 %v823, %v871
  %v873 = vpop.f32.mrf.mxu0
  %v874 = vadd.f32 %v825, %v873
  %875 = vmatmul.bf16.gmra.mxu0 %v512
  %v876 = vpop.f32.mrf.mxu0
  %v877 = vadd.f32 %v828, %v876
  %v878 = vpop.f32.mrf.mxu0
  %v879 = vadd.f32 %v830, %v878
  %880 = vmatmul.bf16.gmra.mxu0 %v516
  %v881 = vpop.f32.mrf.mxu0
  %v882 = vadd.f32 %v833, %v881
  %v883 = vpop.f32.mrf.mxu0
  %v884 = vadd.f32 %v835, %v883
  %885 = vmatmul.bf16.gmra.mxu0 %v520
  %v886 = vpop.f32.mrf.mxu0
  %v887 = vadd.f32 %v838, %v886
  %v888 = vpop.f32.mrf.mxu0
  %v889 = vadd.f32 %v840, %v888
  %890 = vmatmul.bf16.gmra.mxu0 %v524
  %v891 = vpop.f32.mrf.mxu0
  %v892 = vadd.f32 %v843, %v891
  %v893 = vpop.f32.mrf.mxu0
  %v894 = vadd.f32 %v845, %v893
  %895 = vmatmul.bf16.gmra.mxu0 %v528
  %v896 = vpop.f32.mrf.mxu0
  %v897 = vadd.f32 %v848, %v896
  %v898 = vpop.f32.mrf.mxu0
  %v899 = vadd.f32 %v850, %v898
  %900 = vdwg.mxu0
  %901 = vmatpush.bf16.msra.mxu0 %v721
  %902 = vmatpush.bf16.msra.mxu0 %v720
  %903 = vmatpush.bf16.msra.mxu0 %v719
  %904 = vmatpush.bf16.msra.mxu0 %v718
  %905 = vmatpush.bf16.msra.mxu0 %v717
  %906 = vmatpush.bf16.msra.mxu0 %v716
  %907 = vmatpush.bf16.msra.mxu0 %v715
  %908 = vmatpush.bf16.msra.mxu0 %v714
  %909 = vmatmul.bf16.gmra.mxu0 %v501
  %v910 = vpop.f32.mrf.mxu0
  %v911 = vadd.f32 %v862, %v910
  %v912 = vpop.f32.mrf.mxu0
  %v913 = vadd.f32 %v864, %v912
  %914 = vmatmul.bf16.gmra.mxu0 %v505
  %v915 = vpop.f32.mrf.mxu0
  %v916 = vadd.f32 %v867, %v915
  %v917 = vpop.f32.mrf.mxu0
  %v918 = vadd.f32 %v869, %v917
  %919 = vmatmul.bf16.gmra.mxu0 %v509
  %v920 = vpop.f32.mrf.mxu0
  %v921 = vadd.f32 %v872, %v920
  %v922 = vpop.f32.mrf.mxu0
  %v923 = vadd.f32 %v874, %v922
  %924 = vmatmul.bf16.gmra.mxu0 %v513
  %v925 = vpop.f32.mrf.mxu0
  %v926 = vadd.f32 %v877, %v925
  %v927 = vpop.f32.mrf.mxu0
  %v928 = vadd.f32 %v879, %v927
  %929 = vmatmul.bf16.gmra.mxu0 %v517
  %v930 = vpop.f32.mrf.mxu0
  %v931 = vadd.f32 %v882, %v930
  %v932 = vpop.f32.mrf.mxu0
  %v933 = vadd.f32 %v884, %v932
  %934 = vmatmul.bf16.gmra.mxu0 %v521
  %v935 = vpop.f32.mrf.mxu0
  %v936 = vadd.f32 %v887, %v935
  %v937 = vpop.f32.mrf.mxu0
  %v938 = vadd.f32 %v889, %v937
  %939 = vmatmul.bf16.gmra.mxu0 %v525
  %v940 = vpop.f32.mrf.mxu0
  %v941 = vadd.f32 %v892, %v940
  %v942 = vpop.f32.mrf.mxu0
  %v943 = vadd.f32 %v894, %v942
  %944 = vmatmul.bf16.gmra.mxu0 %v529
  %v945 = vpop.f32.mrf.mxu0
  %v946 = vadd.f32 %v897, %v945
  %v947 = vpop.f32.mrf.mxu0
  %v948 = vadd.f32 %v899, %v947
  %949 = vdwg.mxu0
  %vm950 = vcmp.ge.f32.partialorder %v911, 0.0
  %vm951 = vcmp.ge.f32.partialorder %v913, 0.0
  %vm952 = vcmp.ge.f32.partialorder %v916, 0.0
  %vm953 = vcmp.ge.f32.partialorder %v918, 0.0
  %vm954 = vcmp.ge.f32.partialorder %v921, 0.0
  %vm955 = vcmp.ge.f32.partialorder %v923, 0.0
  %vm956 = vcmp.ge.f32.partialorder %v926, 0.0
  %vm957 = vcmp.ge.f32.partialorder %v928, 0.0
  %vm958 = vcmp.ge.f32.partialorder %v931, 0.0
  %vm959 = vcmp.ge.f32.partialorder %v933, 0.0
  %vm960 = vcmp.ge.f32.partialorder %v936, 0.0
  %vm961 = vcmp.ge.f32.partialorder %v938, 0.0
  %vm962 = vcmp.ge.f32.partialorder %v941, 0.0
  %vm963 = vcmp.ge.f32.partialorder %v943, 0.0
  %vm964 = vcmp.ge.f32.partialorder %v946, 0.0
  %vm965 = vcmp.ge.f32.partialorder %v948, 0.0
  %v966 = vmul.f32 %v911, 0.2
  %v967 = vmul.f32 %v913, 0.2
  %v968 = vmul.f32 %v916, 0.2
  %v969 = vmul.f32 %v918, 0.2
  %v970 = vmul.f32 %v921, 0.2
  %v971 = vmul.f32 %v923, 0.2
  %v972 = vmul.f32 %v926, 0.2
  %v973 = vmul.f32 %v928, 0.2
  %v974 = vmul.f32 %v931, 0.2
  %v975 = vmul.f32 %v933, 0.2
  %v976 = vmul.f32 %v936, 0.2
  %v977 = vmul.f32 %v938, 0.2
  %v978 = vmul.f32 %v941, 0.2
  %v979 = vmul.f32 %v943, 0.2
  %v980 = vmul.f32 %v946, 0.2
  %v981 = vmul.f32 %v948, 0.2
  %v982 = vsel %vm950, %v911, %v966
  %v983 = vsel %vm951, %v913, %v967
  %v984 = vsel %vm952, %v916, %v968
  %v985 = vsel %vm953, %v918, %v969
  %v986 = vsel %vm954, %v921, %v970
  %v987 = vsel %vm955, %v923, %v971
  %v988 = vsel %vm956, %v926, %v972
  %v989 = vsel %vm957, %v928, %v973
  %v990 = vsel %vm958, %v931, %v974
  %v991 = vsel %vm959, %v933, %v975
  %v992 = vsel %vm960, %v936, %v976
  %v993 = vsel %vm961, %v938, %v977
  %v994 = vsel %vm962, %v941, %v978
  %v995 = vsel %vm963, %v943, %v979
  %v996 = vsel %vm964, %v946, %v980
  %v997 = vsel %vm965, %v948, %v981
  %v998 = vld [vmem:[%s2] sm:$0xff]
  %v999 = vld [vmem:[%s2 + $0x8] sm:$0xff]
  %v1000 = vld [vmem:[%s2 + $0x10] sm:$0xff]
  %v1001 = vld [vmem:[%s2 + $0x18] sm:$0xff]
  %v1002 = vld [vmem:[%s2 + $0x20] sm:$0xff]
  %v1003 = vld [vmem:[%s2 + $0x28] sm:$0xff]
  %v1004 = vld [vmem:[%s2 + $0x30] sm:$0xff]
  %v1005 = vld [vmem:[%s2 + $0x38] sm:$0xff]
  %v1006 = vmul.f32 %v982, %v998
  %v1007 = vmul.f32 %v983, %v999
  %v1008 = vmul.f32 %v984, %v1000
  %v1009 = vmul.f32 %v985, %v1001
  %v1010 = vmul.f32 %v986, %v1002
  %v1011 = vmul.f32 %v987, %v1003
  %v1012 = vmul.f32 %v988, %v1004
  %v1013 = vmul.f32 %v989, %v1005
  %v1014 = vmul.f32 %v990, %v998
  %v1015 = vmul.f32 %v991, %v999
  %v1016 = vmul.f32 %v992, %v1000
  %v1017 = vmul.f32 %v993, %v1001
  %v1018 = vmul.f32 %v994, %v1002
  %v1019 = vmul.f32 %v995, %v1003
  %v1020 = vmul.f32 %v996, %v1004
  %v1021 = vmul.f32 %v997, %v1005
  %1022 = vadd.xlane.f32.xlu0 %v1006
  %v1023 = vpop.xlane.xlu0 %1022
  %1024 = vadd.xlane.f32.xlu0 %v1007
  %v1025 = vpop.xlane.xlu0 %1024
  %1026 = vadd.xlane.f32.xlu0 %v1008
  %v1027 = vpop.xlane.xlu0 %1026
  %1028 = vadd.xlane.f32.xlu0 %v1009
  %v1029 = vpop.xlane.xlu0 %1028
  %1030 = vadd.xlane.f32.xlu0 %v1010
  %v1031 = vpop.xlane.xlu0 %1030
  %1032 = vadd.xlane.f32.xlu0 %v1011
  %v1033 = vpop.xlane.xlu0 %1032
  %1034 = vadd.xlane.f32.xlu0 %v1012
  %v1035 = vpop.xlane.xlu0 %1034
  %1036 = vadd.xlane.f32.xlu0 %v1013
  %v1037 = vpop.xlane.xlu0 %1036
  %1038 = vadd.xlane.f32.xlu0 %v1014
  %v1039 = vpop.xlane.xlu0 %1038
  %1040 = vadd.xlane.f32.xlu0 %v1015
  %v1041 = vpop.xlane.xlu0 %1040
  %1042 = vadd.xlane.f32.xlu0 %v1016
  %v1043 = vpop.xlane.xlu0 %1042
  %1044 = vadd.xlane.f32.xlu0 %v1017
  %v1045 = vpop.xlane.xlu0 %1044
  %1046 = vadd.xlane.f32.xlu0 %v1018
  %v1047 = vpop.xlane.xlu0 %1046
  %1048 = vadd.xlane.f32.xlu0 %v1019
  %v1049 = vpop.xlane.xlu0 %1048
  %1050 = vadd.xlane.f32.xlu0 %v1020
  %v1051 = vpop.xlane.xlu0 %1050
  %1052 = vadd.xlane.f32.xlu0 %v1021
  %v1053 = vpop.xlane.xlu0 %1052
  %v1070 = vlaneseq
  %v1071 = vand.u32 %v1070, 127
  %v1072 = vperm.slane %v1023, %v1071
  %v1073 = vadd.s32 %v1071, 4294967288
  %v1074 = vperm.slane %v1025, %v1073
  %vm1075 = vcmask 130112
  %v1076 = vsel %vm1075, %v1074, %v1072
  %v1077 = vadd.s32 %v1071, 4294967280
  %v1078 = vperm.slane %v1027, %v1077
  %vm1079 = vcmask 195712
  %v1080 = vsel %vm1079, %v1078, %v1076
  %v1081 = vadd.s32 %v1071, 4294967272
  %v1082 = vperm.slane %v1029, %v1081
  %vm1083 = vcmask 261312
  %v1084 = vsel %vm1083, %v1082, %v1080
  %v1085 = vadd.s32 %v1071, 4294967264
  %v1086 = vperm.slane %v1031, %v1085
  %vm1087 = vcmask 326912
  %v1088 = vsel %vm1087, %v1086, %v1084
  %v1089 = vadd.s32 %v1071, 4294967256
  %v1090 = vperm.slane %v1033, %v1089
  %vm1091 = vcmask 392512
  %v1092 = vsel %vm1091, %v1090, %v1088
  %v1093 = vadd.s32 %v1071, 4294967248
  %v1094 = vperm.slane %v1035, %v1093
  %vm1095 = vcmask 458112
  %v1096 = vsel %vm1095, %v1094, %v1092
  %v1097 = vadd.s32 %v1071, 4294967240
  %v1098 = vperm.slane %v1037, %v1097
  %vm1099 = vcmask 523712
  %v1100 = vsel %vm1099, %v1098, %v1096
  %v1101 = vperm.slane %v1039, %v1071
  %v1102 = vperm.slane %v1041, %v1073
  %v1103 = vsel %vm1075, %v1102, %v1101
  %v1104 = vperm.slane %v1043, %v1077
  %v1105 = vsel %vm1079, %v1104, %v1103
  %v1106 = vperm.slane %v1045, %v1081
  %v1107 = vsel %vm1083, %v1106, %v1105
  %v1108 = vperm.slane %v1047, %v1085
  %v1109 = vsel %vm1087, %v1108, %v1107
  %v1110 = vperm.slane %v1049, %v1089
  %v1111 = vsel %vm1091, %v1110, %v1109
  %v1112 = vperm.slane %v1051, %v1093
  %v1113 = vsel %vm1095, %v1112, %v1111
  %v1114 = vperm.slane %v1053, %v1097
  %v1115 = vsel %vm1099, %v1114, %v1113
  %vm1116 = vcmask 1041409
  %v1117 = vsel %vm1116, %v1115, %v1100
  %vm1119 = vcmask 517120
  %v1120 = vsel %vm1119, %v1117, 0.0
  %1121 = vadd.xlane.f32.xlu0 %v1120
  %v1122 = vpop.xlane.xlu0 %1121
  %s1123 = sld [smem:[#allocation2]]
  %v1124 = vstv %s1123
  %v1125 = vadd.f32 %v1122, %v1124
  %vm1126 = vcmask 1024
  %1127 = vst.msk [vmem:[%s4] sm:$0x3] %vm1126, %v1125
  // Predicated region
  $region18: #{discriminator_forward.5} parent=0 // pred_check
    _
  $region19: #{discriminator_forward.5} parent=0 // pred_check_branch
    %1129 = sbr.rel (0) target = $region21
  $region20: #{discriminator_forward.5} parent=0 // pred_region
    _
  $region21: #{discriminator_forward.5} parent=0 // pred_fallthru
    _
  // Predicated region
  $region22: #{discriminator_forward.5} parent=0 // pred_check
    _
  $region23: #{discriminator_forward.5} parent=0 // pred_check_branch
    %1131 = sbr.rel (0) target = $region25
  $region24: #{discriminator_forward.5} parent=0 // pred_region
    _
  $region25: #{discriminator_forward.5} parent=0 // pred_fallthru
    _

</llo_original>
